<compile_context>
chip_gen: v7x
topology: tpu7x:2x2x1
jax: 0.10.0
libtpu: 0.0.40
codegen_flags: <defaults>
</compile_context>

<pallas_src>
import functools
import math

import jax
import jax.numpy as jnp
from jax import lax
from jax.experimental import pallas as pl
from jax.experimental.pallas import tpu as pltpu

DTYPE = jnp.bfloat16

# ----- tiny Qwen2 config (consistent with the module's __init__) -----
VOCAB = 64
HIDDEN = 32
INTER = 64
N_LAYERS = 2
N_HEADS = 4
N_KV_HEADS = 2
HEAD_DIM = HIDDEN // N_HEADS              # 8
KV_DIM = N_KV_HEADS * HEAD_DIM            # 16
QKV_DIM = HIDDEN + 2 * KV_DIM             # 64  (q | k | v columns of the fused projection)
EPS = 1e-6
ROPE_THETA = 10000.0
LOG2_E = 1.4426950408889634

_NN = (((1,), (0,)), ((), ()))            # x[m,k] @ w[k,n]


# =======================  in-kernel helpers  =======================

def _rmsnorm(x, w):
    """x (S,H) f32, w (1,H) f32."""
    inv = lax.rsqrt(jnp.mean(x * x, axis=-1, keepdims=True) + EPS)
    return x * inv * w


def _rope(x, cos, sin):
    """rotate-half RoPE on a head-stacked (n_heads, S, D) f32 tensor; cos/sin (1, S, D)."""
    half = HEAD_DIM // 2
    rot = jnp.concatenate([-x[..., half:], x[..., :half]], axis=-1)
    return x * cos + rot * sin


# =======================  fused whole-model kernel  =======================

def _qwen2_kernel(x_ref, cos_ref, sin_ref,
                  ln1_ref, qkv_w_ref, qkv_b_ref, o_w_ref, ln2_ref,
                  gu_w_ref, down_w_ref, fnorm_ref, head_ref,
                  logits_ref, kv_ref,
                  s_scr, *, qk_scale):
    """Grid = (batch, layer).  One grid step = one decoder layer for one batch's S tokens.
    s_scr carries (hidden + residual) across layer steps in f32 VMEM."""
    l = pl.program_id(1)
    f32 = jnp.float32
    cdt = x_ref.dtype                     # bf16 MXU operand dtype
    D = HEAD_DIM
    rep = N_HEADS // N_KV_HEADS

    # ---- layer 0: load embeddings for this batch into the resident stream ----
    @pl.when(l == 0)
    def _():
        s_scr[...] = x_ref[...].astype(f32)

    # skip_rmsnorm #1: hidden+residual is already the carried stream.
    x1 = s_scr[...]                                                  # (S, H) f32
    n1 = _rmsnorm(x1, ln1_ref[0].astype(f32)).astype(cdt)

    # ---- fused Q/KV projection (weights pre-transposed to (K, N)), bias add ----
    qkv = lax.dot_general(n1, qkv_w_ref[0], _NN, preferred_element_type=f32)
    qkv = qkv + qkv_b_ref[0].astype(f32)                             # (S, 64)

    # ---- head-stacked layouts (static 8-wide lane slices, leading-axis stacks) ----
    q_s = jnp.stack([qkv[:, h * D:(h + 1) * D] for h in range(N_HEADS)], axis=0)        # (nH, S, D)
    k_s = jnp.stack([qkv[:, HIDDEN + g * D:HIDDEN + (g + 1) * D]
                     for g in range(N_KV_HEADS)], axis=0)                               # (nKV, S, D)
    v_s = jnp.stack([qkv[:, HIDDEN + KV_DIM + g * D:HIDDEN + KV_DIM + (g + 1) * D]
                     for g in range(N_KV_HEADS)], axis=0)                               # (nKV, S, D)

    # ---- RoPE applied once to the full stacks ----
    cos = cos_ref[...][None]                                         # (1, S, D) f32
    sin = sin_ref[...][None]
    q_s = _rope(q_s, cos, sin)
    k_s = _rope(k_s, cos, sin)

    # ---- KV-cache payload: [RoPE'd K heads | raw V heads] for this (layer, batch) block ----
    kv_ref[0] = jnp.concatenate([k_s[g] for g in range(N_KV_HEADS)] +
                                [v_s[g] for g in range(N_KV_HEADS)],
                                axis=-1).astype(kv_ref.dtype)        # (S, 2*KV_DIM)

    # ---- GQA repeat along the (leading) head axis, then batched attention ----
    k_rep = jnp.concatenate([k_s[g:g + 1] for g in range(N_KV_HEADS) for _ in range(rep)],
                            axis=0).astype(cdt)                      # (nH, S, D)
    v_rep = jnp.concatenate([v_s[g:g + 1] for g in range(N_KV_HEADS) for _ in range(rep)],
                            axis=0).astype(cdt)
    q16 = q_s.astype(cdt)

    s = jnp.einsum('hqd,hkd->hqk', q16, k_rep,
                   preferred_element_type=f32) * qk_scale            # (nH, S, S)
    seq = s.shape[-1]
    row = lax.broadcasted_iota(jnp.int32, (1, seq, seq), 1)
    col = lax.broadcasted_iota(jnp.int32, (1, seq, seq), 2)
    s = jnp.where(col <= row, s, -1e30)                              # causal (finite bias)
    m = jnp.max(s, axis=-1, keepdims=True)
    p = jnp.exp2(s - m)                                              # qk_scale folds in log2(e)
    linv = pl.reciprocal(jnp.sum(p, axis=-1, keepdims=True), approx=True)
    o = jnp.einsum('hqk,hkd->hqd', p.astype(cdt), v_rep,
                   preferred_element_type=f32) * linv                # (nH, S, D) f32

    attn = jnp.concatenate([o[h] for h in range(N_HEADS)], axis=-1).astype(cdt)  # (S, HIDDEN)

    # ---- o_proj (no bias) ----
    attn_o = lax.dot_general(attn, o_w_ref[0], _NN, preferred_element_type=f32)

    # ---- skip_rmsnorm #2 (post-attention) ----
    x2 = attn_o + x1
    n2 = _rmsnorm(x2, ln2_ref[0].astype(f32)).astype(cdt)

    # ---- fused MLP: down( silu(gate(x)) * up(x) ) with fused gate|up weight ----
    gu = lax.dot_general(n2, gu_w_ref[0], _NN, preferred_element_type=f32)   # (S, 2*INTER)
    g_ = gu[:, :INTER]
    u_ = gu[:, INTER:]
    sig = pl.reciprocal(1.0 + jnp.exp(-g_), approx=True)
    hmlp = (g_ * sig * u_).astype(cdt)
    mlp = lax.dot_general(hmlp, down_w_ref[0], _NN, preferred_element_type=f32)

    # carry (hidden + residual) for the next layer
    s_new = mlp + x2
    s_scr[...] = s_new

    # ---- last layer: fused final RMSNorm + lm_head ----
    @pl.when(l == pl.num_programs(1) - 1)
    def _():
        fin = _rmsnorm(s_new, fnorm_ref[...].astype(f32)).astype(cdt)
        logits_ref[...] = lax.dot_general(fin, head_ref[...], _NN,
                                          preferred_element_type=f32).astype(logits_ref.dtype)


# =======================  wrapper  =======================

def _rotary_tables(start_pos, seq):
    """Qwen2RotaryEmbedding, as (S, HEAD_DIM) f32 cos/sin (no B tiling)."""
    inv_freq = 1.0 / (ROPE_THETA ** (jnp.arange(0, HEAD_DIM, 2, dtype=jnp.float32) / HEAD_DIM))
    pos = jnp.arange(start_pos, start_pos + seq, dtype=jnp.float32)
    freqs = pos[:, None] * inv_freq[None, :]
    emb = jnp.concatenate([freqs, freqs], axis=-1)                   # (S, D)
    return jnp.cos(emb), jnp.sin(emb)


@functools.partial(jax.jit, static_argnums=(2,))
def qwen2_forward(params, input_ids, start_pos, kv_cache):
    """Qwen2Model.forward, prefill path (seq_len > 1)."""
    B, S = input_ids.shape
    M = B * S
    h = params["embed"][input_ids].reshape(M, HIDDEN)                # embedding gather (glue)
    cos, sin = _rotary_tables(start_pos, S)
    qk_scale = (1.0 / math.sqrt(HEAD_DIM)) * LOG2_E                  # prefill uses exp2 softmax

    # TODO(synk): seq_len == 1 decode path (flash_decoding over the KV cache) is not implemented.

    full = lambda shape: shape                                       # readability only
    in_specs = [
        pl.BlockSpec((S, HIDDEN), lambda b, l: (b, 0)),              # embeddings, per batch
        pl.BlockSpec(full((S, HEAD_DIM)), lambda b, l: (0, 0)),      # cos
        pl.BlockSpec(full((S, HEAD_DIM)), lambda b, l: (0, 0)),      # sin
        pl.BlockSpec((1, 1, HIDDEN), lambda b, l: (l, 0, 0)),        # ln1
        pl.BlockSpec((1, HIDDEN, QKV_DIM), lambda b, l: (l, 0, 0)),  # qkv_w
        pl.BlockSpec((1, 1, QKV_DIM), lambda b, l: (l, 0, 0)),       # qkv_b
        pl.BlockSpec((1, HIDDEN, HIDDEN), lambda b, l: (l, 0, 0)),   # o_w
        pl.BlockSpec((1, 1, HIDDEN), lambda b, l: (l, 0, 0)),        # ln2
        pl.BlockSpec((1, HIDDEN, 2 * INTER), lambda b, l: (l, 0, 0)),  # gate|up fused
        pl.BlockSpec((1, INTER, HIDDEN), lambda b, l: (l, 0, 0)),    # down
        pl.BlockSpec(full((1, HIDDEN)), lambda b, l: (0, 0)),        # final norm
        pl.BlockSpec(full((HIDDEN, VOCAB)), lambda b, l: (0, 0)),    # lm_head
    ]
    out_specs = (
        pl.BlockSpec((S, VOCAB), lambda b, l: (b, 0)),               # logits, per batch
        pl.BlockSpec((1, S, 2 * KV_DIM), lambda b, l: (l, b, 0)),    # KV per (layer, batch)
    )

    logits, kv_new = pl.pallas_call(
        functools.partial(_qwen2_kernel, qk_scale=qk_scale),
        grid=(B, N_LAYERS),
        out_shape=(jax.ShapeDtypeStruct((M, VOCAB), DTYPE),
                   jax.ShapeDtypeStruct((N_LAYERS, M, 2 * KV_DIM), DTYPE)),
        in_specs=in_specs,
        out_specs=out_specs,
        scratch_shapes=[pltpu.VMEM((S, HIDDEN), jnp.float32)],
        compiler_params=pltpu.CompilerParams(
            dimension_semantics=("parallel", "arbitrary")),
    )(h, cos, sin,
      params["ln1_w"], params["qkv_w"], params["qkv_b"], params["o_w"], params["ln2_w"],
      params["gateup_w"], params["down_w"], params["norm_w"], params["lm_head"])

    # Prefill with start_pos == 0 and contiguous cur_select_index covers every cache row,
    # so the kernel's stacked KV output *is* the updated cache (no dynamic_update_slice copy).
    # TODO(synk): start_pos > 0 / non-contiguous / paged cur_select_index scatter not modeled.
    new_cache = kv_new.reshape(N_LAYERS, M, 2 * N_KV_HEADS, HEAD_DIM)
    del kv_cache
    return logits.reshape(B, S, VOCAB), new_cache


# =======================  deterministic parameter init  =======================

def init_params(key):
    ks = jax.random.split(key, 7)

    def u(k, shape, scale):
        return (jax.random.uniform(k, shape, jnp.float32, -1.0, 1.0) * scale).astype(DTYPE)

    return dict(
        embed=(jax.random.normal(ks[0], (VOCAB, HIDDEN), jnp.float32) * 0.5).astype(DTYPE),
        lm_head=u(ks[1], (HIDDEN, VOCAB), 0.1),                      # pre-transposed (K, N)
        norm_w=jnp.ones((1, HIDDEN), DTYPE),
        ln1_w=jnp.ones((N_LAYERS, 1, HIDDEN), DTYPE),
        ln2_w=jnp.ones((N_LAYERS, 1, HIDDEN), DTYPE),
        qkv_w=u(ks[2], (N_LAYERS, HIDDEN, QKV_DIM), 0.08),           # (L, K, N): q | k | v cols
        qkv_b=u(ks[3], (N_LAYERS, 1, QKV_DIM), 0.08),
        o_w=u(ks[4], (N_LAYERS, HIDDEN, HIDDEN), 0.08),              # (L, K, N)
        gateup_w=u(ks[5], (N_LAYERS, HIDDEN, 2 * INTER), 0.08),      # (L, K, 2N): gate | up
        down_w=u(ks[6], (N_LAYERS, INTER, HIDDEN), 0.08),            # (L, K, N)
    )


if __name__ == "__main__":
    key = jax.random.PRNGKey(0)
    pkey, ikey = jax.random.split(key)
    params = init_params(pkey)

    B, S = 2, 8
    input_ids = jax.random.randint(ikey, (B, S), 0, VOCAB)
    kv_cache = jnp.zeros((N_LAYERS, B * S, 2 * N_KV_HEADS, HEAD_DIM), DTYPE)

    logits, kv_cache = qwen2_forward(params, input_ids, 0, kv_cache)
    logits = jax.block_until_ready(logits)

    assert logits.shape == (B, S, VOCAB), logits.shape
    assert logits.dtype == DTYPE, logits.dtype
    assert kv_cache.shape == (N_LAYERS, B * S, 2 * N_KV_HEADS, HEAD_DIM)
    assert bool(jnp.all(jnp.isfinite(logits.astype(jnp.float32))))
    print("KERNEL_OK")
</pallas_src>

<mosaic_0001>
module attributes {stable_mosaic.version = 11 : i64} {
  func.func @_qwen2_kernel(%arg0: i32, %arg1: i32, %arg2: memref<8x32xbf16, #tpu.memory_space<vmem>>, %arg3: memref<8x8xf32, #tpu.memory_space<vmem>>, %arg4: memref<8x8xf32, #tpu.memory_space<vmem>>, %arg5: memref<1x1x32xbf16, #tpu.memory_space<vmem>>, %arg6: memref<1x32x64xbf16, #tpu.memory_space<vmem>>, %arg7: memref<1x1x64xbf16, #tpu.memory_space<vmem>>, %arg8: memref<1x32x32xbf16, #tpu.memory_space<vmem>>, %arg9: memref<1x1x32xbf16, #tpu.memory_space<vmem>>, %arg10: memref<1x32x128xbf16, #tpu.memory_space<vmem>>, %arg11: memref<1x64x32xbf16, #tpu.memory_space<vmem>>, %arg12: memref<1x32xbf16, #tpu.memory_space<vmem>>, %arg13: memref<32x64xbf16, #tpu.memory_space<vmem>>, %arg14: memref<8x64xbf16, #tpu.memory_space<vmem>>, %arg15: memref<1x8x32xbf16, #tpu.memory_space<vmem>>, %arg16: memref<8x32xf32, #tpu.memory_space<vmem>>) attributes {dimension_semantics = [#tpu.dimension_semantics<parallel>, #tpu.dimension_semantics<arbitrary>], iteration_bounds = array<i64: 2, 2>, scalar_prefetch = 0 : i64, scratch_operands = 1 : i64, tpu.core_type = #tpu.core_type<tc>, window_params = [{transform_indices = @transform_0, window_bounds = array<i64: 8, 32>}, {pipeline_mode = #tpu.pipeline_mode<synchronous>, transform_indices = @transform_1, window_bounds = array<i64: 8, 8>}, {pipeline_mode = #tpu.pipeline_mode<synchronous>, transform_indices = @transform_2, window_bounds = array<i64: 8, 8>}, {transform_indices = @transform_3, window_bounds = array<i64: 1, 1, 32>}, {transform_indices = @transform_4, window_bounds = array<i64: 1, 32, 64>}, {transform_indices = @transform_5, window_bounds = array<i64: 1, 1, 64>}, {transform_indices = @transform_6, window_bounds = array<i64: 1, 32, 32>}, {transform_indices = @transform_7, window_bounds = array<i64: 1, 1, 32>}, {transform_indices = @transform_8, window_bounds = array<i64: 1, 32, 128>}, {transform_indices = @transform_9, window_bounds = array<i64: 1, 64, 32>}, {pipeline_mode = #tpu.pipeline_mode<synchronous>, transform_indices = @transform_10, window_bounds = array<i64: 1, 32>}, {pipeline_mode = #tpu.pipeline_mode<synchronous>, transform_indices = @transform_11, window_bounds = array<i64: 32, 64>}, {transform_indices = @transform_12, window_bounds = array<i64: 8, 64>}, {transform_indices = @transform_13, window_bounds = array<i64: 1, 8, 32>}]} {
    %c0_i32 = arith.constant 0 : i32
    %0 = arith.cmpi eq, %arg1, %c0_i32 : i32
    %1 = arith.extui %0 : i1 to i32
    %c0_i32_0 = arith.constant 0 : i32
    %2 = arith.cmpi ne, %1, %c0_i32_0 : i32
    scf.if %2 {
      %c0_52 = arith.constant 0 : index
      %c0_53 = arith.constant 0 : index
      %171 = vector.load %arg2[%c0_52, %c0_53] : memref<8x32xbf16, #tpu.memory_space<vmem>>, vector<8x32xbf16>
      %172 = arith.extf %171 : vector<8x32xbf16> to vector<8x32xf32>
      %c0_54 = arith.constant 0 : index
      %c0_55 = arith.constant 0 : index
      %173 = vector.load %arg16[%c0_54, %c0_55] : memref<8x32xf32, #tpu.memory_space<vmem>>, vector<8x32xf32>
      tpu.vector_store %arg16[%c0_54, %c0_55], %172 {strides = array<i32>} : memref<8x32xf32, #tpu.memory_space<vmem>>, vector<8x32xf32>,
    } else {
    }
    %c0 = arith.constant 0 : index
    %c0_1 = arith.constant 0 : index
    %3 = vector.load %arg16[%c0, %c0_1] : memref<8x32xf32, #tpu.memory_space<vmem>>, vector<8x32xf32>
    %c0_2 = arith.constant 0 : index
    %c0_3 = arith.constant 0 : index
    %c0_4 = arith.constant 0 : index
    %4 = vector.load %arg5[%c0_2, %c0_3, %c0_4] : memref<1x1x32xbf16, #tpu.memory_space<vmem>>, vector<1x1x32xbf16>
    %5 = vector.shape_cast %4 : vector<1x1x32xbf16> to vector<1x32xbf16>
    %6 = arith.extf %5 : vector<1x32xbf16> to vector<1x32xf32>
    %7 = arith.mulf %3, %3 : vector<8x32xf32>
    %cst = arith.constant dense<0.000000e+00> : vector<8xf32>
    %8 = vector.multi_reduction <add>, %7, %cst [1] : vector<8x32xf32> to vector<8xf32>
    %9 = vector.shape_cast %8 : vector<8xf32> to vector<8x1xf32>
    %cst_5 = arith.constant 3.200000e+01 : f32
    %10 = vector.broadcast %cst_5 : f32 to vector<8x1xf32>
    %11 = arith.divf %9, %10 : vector<8x1xf32>
    %cst_6 = arith.constant 9.99999997E-7 : f32
    %12 = vector.broadcast %cst_6 : f32 to vector<8x1xf32>
    %13 = arith.addf %11, %12 : vector<8x1xf32>
    %14 = math.rsqrt %13 : vector<8x1xf32>
    %15 = vector.broadcast %14 : vector<8x1xf32> to vector<8x32xf32>
    %16 = arith.mulf %3, %15 : vector<8x32xf32>
    %17 = vector.broadcast %6 : vector<1x32xf32> to vector<8x32xf32>
    %18 = arith.mulf %16, %17 : vector<8x32xf32>
    %19 = arith.truncf %18 : vector<8x32xf32> to vector<8x32xbf16>
    %c0_7 = arith.constant 0 : index
    %c0_8 = arith.constant 0 : index
    %c0_9 = arith.constant 0 : index
    %20 = vector.load %arg6[%c0_7, %c0_8, %c0_9] : memref<1x32x64xbf16, #tpu.memory_space<vmem>>, vector<1x32x64xbf16>
    %21 = vector.shape_cast %20 : vector<1x32x64xbf16> to vector<32x64xbf16>
    %cst_10 = arith.constant dense<0.000000e+00> : vector<8x64xf32>
    %22 = tpu.matmul %19, %21, %cst_10 {dimension_numbers = #tpu.dot_dimension_numbers<[1], [0], [0], [1], [0, 0, 1, 1], [], []>} : vector<8x32xbf16>, vector<32x64xbf16>, vector<8x64xf32> -> vector<8x64xf32>
    %c0_11 = arith.constant 0 : index
    %c0_12 = arith.constant 0 : index
    %c0_13 = arith.constant 0 : index
    %23 = vector.load %arg7[%c0_11, %c0_12, %c0_13] : memref<1x1x64xbf16, #tpu.memory_space<vmem>>, vector<1x1x64xbf16>
    %24 = vector.shape_cast %23 : vector<1x1x64xbf16> to vector<1x64xbf16>
    %25 = arith.extf %24 : vector<1x64xbf16> to vector<1x64xf32>
    %26 = vector.broadcast %25 : vector<1x64xf32> to vector<8x64xf32>
    %27 = arith.addf %22, %26 : vector<8x64xf32>
    %28 = vector.extract_strided_slice %27 {offsets = [0, 0], sizes = [8, 8], strides = [1, 1]} : vector<8x64xf32> to vector<8x8xf32>
    %29 = vector.extract_strided_slice %27 {offsets = [0, 8], sizes = [8, 8], strides = [1, 1]} : vector<8x64xf32> to vector<8x8xf32>
    %30 = vector.extract_strided_slice %27 {offsets = [0, 16], sizes = [8, 8], strides = [1, 1]} : vector<8x64xf32> to vector<8x8xf32>
    %31 = vector.extract_strided_slice %27 {offsets = [0, 24], sizes = [8, 8], strides = [1, 1]} : vector<8x64xf32> to vector<8x8xf32>
    %32 = vector.shape_cast %28 : vector<8x8xf32> to vector<1x8x8xf32>
    %33 = vector.shape_cast %29 : vector<8x8xf32> to vector<1x8x8xf32>
    %34 = vector.shape_cast %30 : vector<8x8xf32> to vector<1x8x8xf32>
    %35 = vector.shape_cast %31 : vector<8x8xf32> to vector<1x8x8xf32>
    %36 = tpu.concatenate %32, %33, %34, %35 in 0 : vector<1x8x8xf32>, vector<1x8x8xf32>, vector<1x8x8xf32>, vector<1x8x8xf32> -> vector<4x8x8xf32>
    %37 = vector.extract_strided_slice %27 {offsets = [0, 32], sizes = [8, 8], strides = [1, 1]} : vector<8x64xf32> to vector<8x8xf32>
    %38 = vector.extract_strided_slice %27 {offsets = [0, 40], sizes = [8, 8], strides = [1, 1]} : vector<8x64xf32> to vector<8x8xf32>
    %39 = vector.shape_cast %37 : vector<8x8xf32> to vector<1x8x8xf32>
    %40 = vector.shape_cast %38 : vector<8x8xf32> to vector<1x8x8xf32>
    %41 = tpu.concatenate %39, %40 in 0 : vector<1x8x8xf32>, vector<1x8x8xf32> -> vector<2x8x8xf32>
    %42 = vector.extract_strided_slice %27 {offsets = [0, 48], sizes = [8, 8], strides = [1, 1]} : vector<8x64xf32> to vector<8x8xf32>
    %43 = vector.extract_strided_slice %27 {offsets = [0, 56], sizes = [8, 8], strides = [1, 1]} : vector<8x64xf32> to vector<8x8xf32>
    %44 = vector.shape_cast %42 : vector<8x8xf32> to vector<1x8x8xf32>
    %45 = vector.shape_cast %43 : vector<8x8xf32> to vector<1x8x8xf32>
    %46 = tpu.concatenate %44, %45 in 0 : vector<1x8x8xf32>, vector<1x8x8xf32> -> vector<2x8x8xf32>
    %c0_14 = arith.constant 0 : index
    %c0_15 = arith.constant 0 : index
    %47 = vector.load %arg3[%c0_14, %c0_15] : memref<8x8xf32, #tpu.memory_space<vmem>>, vector<8x8xf32>
    %48 = vector.shape_cast %47 : vector<8x8xf32> to vector<1x8x8xf32>
    %c0_16 = arith.constant 0 : index
    %c0_17 = arith.constant 0 : index
    %49 = vector.load %arg4[%c0_16, %c0_17] : memref<8x8xf32, #tpu.memory_space<vmem>>, vector<8x8xf32>
    %50 = vector.shape_cast %49 : vector<8x8xf32> to vector<1x8x8xf32>
    %51 = vector.extract_strided_slice %36 {offsets = [0, 0, 4], sizes = [4, 8, 4], strides = [1, 1, 1]} : vector<4x8x8xf32> to vector<4x8x4xf32>
    %cst_18 = arith.constant 0.000000e+00 : f32
    %52 = vector.broadcast %cst_18 : f32 to vector<4x8x4xf32>
    %53 = arith.subf %52, %51 : vector<4x8x4xf32>
    %54 = vector.extract_strided_slice %36 {offsets = [0, 0, 0], sizes = [4, 8, 4], strides = [1, 1, 1]} : vector<4x8x8xf32> to vector<4x8x4xf32>
    %55 = tpu.concatenate %53, %54 in 2 : vector<4x8x4xf32>, vector<4x8x4xf32> -> vector<4x8x8xf32>
    %56 = vector.broadcast %48 : vector<1x8x8xf32> to vector<4x8x8xf32>
    %57 = arith.mulf %36, %56 : vector<4x8x8xf32>
    %58 = vector.broadcast %50 : vector<1x8x8xf32> to vector<4x8x8xf32>
    %59 = arith.mulf %55, %58 : vector<4x8x8xf32>
    %60 = arith.addf %57, %59 : vector<4x8x8xf32>
    %61 = vector.extract_strided_slice %41 {offsets = [0, 0, 4], sizes = [2, 8, 4], strides = [1, 1, 1]} : vector<2x8x8xf32> to vector<2x8x4xf32>
    %cst_19 = arith.constant 0.000000e+00 : f32
    %62 = vector.broadcast %cst_19 : f32 to vector<2x8x4xf32>
    %63 = arith.subf %62, %61 : vector<2x8x4xf32>
    %64 = vector.extract_strided_slice %41 {offsets = [0, 0, 0], sizes = [2, 8, 4], strides = [1, 1, 1]} : vector<2x8x8xf32> to vector<2x8x4xf32>
    %65 = tpu.concatenate %63, %64 in 2 : vector<2x8x4xf32>, vector<2x8x4xf32> -> vector<2x8x8xf32>
    %66 = vector.broadcast %48 : vector<1x8x8xf32> to vector<2x8x8xf32>
    %67 = arith.mulf %41, %66 : vector<2x8x8xf32>
    %68 = vector.broadcast %50 : vector<1x8x8xf32> to vector<2x8x8xf32>
    %69 = arith.mulf %65, %68 : vector<2x8x8xf32>
    %70 = arith.addf %67, %69 : vector<2x8x8xf32>
    %71 = vector.extract_strided_slice %70 {offsets = [0, 0, 0], sizes = [1, 8, 8], strides = [1, 1, 1]} : vector<2x8x8xf32> to vector<1x8x8xf32>
    %72 = vector.shape_cast %71 : vector<1x8x8xf32> to vector<8x8xf32>
    %73 = vector.extract_strided_slice %70 {offsets = [1, 0, 0], sizes = [1, 8, 8], strides = [1, 1, 1]} : vector<2x8x8xf32> to vector<1x8x8xf32>
    %74 = vector.shape_cast %73 : vector<1x8x8xf32> to vector<8x8xf32>
    %75 = vector.extract_strided_slice %46 {offsets = [0, 0, 0], sizes = [1, 8, 8], strides = [1, 1, 1]} : vector<2x8x8xf32> to vector<1x8x8xf32>
    %76 = vector.shape_cast %75 : vector<1x8x8xf32> to vector<8x8xf32>
    %77 = vector.extract_strided_slice %46 {offsets = [1, 0, 0], sizes = [1, 8, 8], strides = [1, 1, 1]} : vector<2x8x8xf32> to vector<1x8x8xf32>
    %78 = vector.shape_cast %77 : vector<1x8x8xf32> to vector<8x8xf32>
    %79 = tpu.concatenate %72, %74, %76, %78 in 1 : vector<8x8xf32>, vector<8x8xf32>, vector<8x8xf32>, vector<8x8xf32> -> vector<8x32xf32>
    %80 = arith.truncf %79 : vector<8x32xf32> to vector<8x32xbf16>
    %c0_20 = arith.constant 0 : index
    %c0_21 = arith.constant 0 : index
    %c0_22 = arith.constant 0 : index
    %81 = vector.load %arg15[%c0_20, %c0_21, %c0_22] : memref<1x8x32xbf16, #tpu.memory_space<vmem>>, vector<1x8x32xbf16>
    %82 = vector.shape_cast %81 : vector<1x8x32xbf16> to vector<8x32xbf16>
    %83 = vector.shape_cast %80 : vector<8x32xbf16> to vector<1x8x32xbf16>
    tpu.vector_store %arg15[%c0_20, %c0_21, %c0_22], %83 {strides = array<i32>} : memref<1x8x32xbf16, #tpu.memory_space<vmem>>, vector<1x8x32xbf16>,
    %84 = vector.extract_strided_slice %70 {offsets = [0, 0, 0], sizes = [1, 8, 8], strides = [1, 1, 1]} : vector<2x8x8xf32> to vector<1x8x8xf32>
    %85 = vector.extract_strided_slice %70 {offsets = [0, 0, 0], sizes = [1, 8, 8], strides = [1, 1, 1]} : vector<2x8x8xf32> to vector<1x8x8xf32>
    %86 = vector.extract_strided_slice %70 {offsets = [1, 0, 0], sizes = [1, 8, 8], strides = [1, 1, 1]} : vector<2x8x8xf32> to vector<1x8x8xf32>
    %87 = vector.extract_strided_slice %70 {offsets = [1, 0, 0], sizes = [1, 8, 8], strides = [1, 1, 1]} : vector<2x8x8xf32> to vector<1x8x8xf32>
    %88 = tpu.concatenate %84, %85, %86, %87 in 0 : vector<1x8x8xf32>, vector<1x8x8xf32>, vector<1x8x8xf32>, vector<1x8x8xf32> -> vector<4x8x8xf32>
    %89 = arith.truncf %88 : vector<4x8x8xf32> to vector<4x8x8xbf16>
    %90 = vector.extract_strided_slice %46 {offsets = [0, 0, 0], sizes = [1, 8, 8], strides = [1, 1, 1]} : vector<2x8x8xf32> to vector<1x8x8xf32>
    %91 = vector.extract_strided_slice %46 {offsets = [0, 0, 0], sizes = [1, 8, 8], strides = [1, 1, 1]} : vector<2x8x8xf32> to vector<1x8x8xf32>
    %92 = vector.extract_strided_slice %46 {offsets = [1, 0, 0], sizes = [1, 8, 8], strides = [1, 1, 1]} : vector<2x8x8xf32> to vector<1x8x8xf32>
    %93 = vector.extract_strided_slice %46 {offsets = [1, 0, 0], sizes = [1, 8, 8], strides = [1, 1, 1]} : vector<2x8x8xf32> to vector<1x8x8xf32>
    %94 = tpu.concatenate %90, %91, %92, %93 in 0 : vector<1x8x8xf32>, vector<1x8x8xf32>, vector<1x8x8xf32>, vector<1x8x8xf32> -> vector<4x8x8xf32>
    %95 = arith.truncf %94 : vector<4x8x8xf32> to vector<4x8x8xbf16>
    %96 = arith.truncf %60 : vector<4x8x8xf32> to vector<4x8x8xbf16>
    "tpu.trace_start"() <{level = 10 : i32, message = "hqd,hkd->hqk"}> : () -> ()
    %cst_23 = arith.constant dense<0.000000e+00> : vector<4x8x8xf32>
    %97 = tpu.matmul %96, %89, %cst_23 {dimension_numbers = #tpu.dot_dimension_numbers<[2], [2], [1], [1], [0, 0, 0, 1, 1, 1], [0], [0]>} : vector<4x8x8xbf16>, vector<4x8x8xbf16>, vector<4x8x8xf32> -> vector<4x8x8xf32>
    "tpu.trace_stop"() : () -> ()
    %cst_24 = arith.constant 0.510069728 : f32
    %98 = vector.broadcast %cst_24 : f32 to vector<4x8x8xf32>
    %99 = arith.mulf %97, %98 : vector<4x8x8xf32>
    %100 = tpu.iota {dimensions = array<i32: 1>} : vector<1x8x8xi32>
    %101 = tpu.iota {dimensions = array<i32: 2>} : vector<1x8x8xi32>
    %102 = arith.cmpi sle, %101, %100 : vector<1x8x8xi32>
    %cst_25 = arith.constant -1.000000e+30 : f32
    %103 = vector.shape_cast %102 : vector<1x8x8xi1> to vector<1x8x8xi1>
    %104 = vector.broadcast %103 : vector<1x8x8xi1> to vector<4x8x8xi1>
    %105 = vector.broadcast %cst_25 : f32 to vector<4x8x8xf32>
    %106 = arith.select %104, %99, %105 : vector<4x8x8xi1>, vector<4x8x8xf32>
    %cst_26 = arith.constant dense<0xFF800000> : vector<4x8xf32>
    %107 = vector.multi_reduction <maximumf>, %106, %cst_26 [2] : vector<4x8x8xf32> to vector<4x8xf32>
    %108 = vector.shape_cast %107 : vector<4x8xf32> to vector<4x8x1xf32>
    %109 = vector.broadcast %108 : vector<4x8x1xf32> to vector<4x8x8xf32>
    %110 = arith.subf %106, %109 : vector<4x8x8xf32>
    %111 = math.exp2 %110 : vector<4x8x8xf32>
    %cst_27 = arith.constant dense<0.000000e+00> : vector<4x8xf32>
    %112 = vector.multi_reduction <add>, %111, %cst_27 [2] : vector<4x8x8xf32> to vector<4x8xf32>
    %113 = vector.shape_cast %112 : vector<4x8xf32> to vector<4x8x1xf32>
    %114 = tpu.reciprocal %113 {approx = true} : vector<4x8x1xf32> -> vector<4x8x1xf32>
    %115 = arith.truncf %111 : vector<4x8x8xf32> to vector<4x8x8xbf16>
    "tpu.trace_start"() <{level = 10 : i32, message = "hqk,hkd->hqd"}> : () -> ()
    %cst_28 = arith.constant dense<0.000000e+00> : vector<4x8x8xf32>
    %116 = tpu.matmul %115, %95, %cst_28 {dimension_numbers = #tpu.dot_dimension_numbers<[2], [1], [1], [2], [0, 0, 0, 1, 1, 2], [0], [0]>} : vector<4x8x8xbf16>, vector<4x8x8xbf16>, vector<4x8x8xf32> -> vector<4x8x8xf32>
    "tpu.trace_stop"() : () -> ()
    %117 = vector.broadcast %114 : vector<4x8x1xf32> to vector<4x8x8xf32>
    %118 = arith.mulf %116, %117 : vector<4x8x8xf32>
    %119 = vector.extract_strided_slice %118 {offsets = [0, 0, 0], sizes = [1, 8, 8], strides = [1, 1, 1]} : vector<4x8x8xf32> to vector<1x8x8xf32>
    %120 = vector.shape_cast %119 : vector<1x8x8xf32> to vector<8x8xf32>
    %121 = vector.extract_strided_slice %118 {offsets = [1, 0, 0], sizes = [1, 8, 8], strides = [1, 1, 1]} : vector<4x8x8xf32> to vector<1x8x8xf32>
    %122 = vector.shape_cast %121 : vector<1x8x8xf32> to vector<8x8xf32>
    %123 = vector.extract_strided_slice %118 {offsets = [2, 0, 0], sizes = [1, 8, 8], strides = [1, 1, 1]} : vector<4x8x8xf32> to vector<1x8x8xf32>
    %124 = vector.shape_cast %123 : vector<1x8x8xf32> to vector<8x8xf32>
    %125 = vector.extract_strided_slice %118 {offsets = [3, 0, 0], sizes = [1, 8, 8], strides = [1, 1, 1]} : vector<4x8x8xf32> to vector<1x8x8xf32>
    %126 = vector.shape_cast %125 : vector<1x8x8xf32> to vector<8x8xf32>
    %127 = tpu.concatenate %120, %122, %124, %126 in 1 : vector<8x8xf32>, vector<8x8xf32>, vector<8x8xf32>, vector<8x8xf32> -> vector<8x32xf32>
    %128 = arith.truncf %127 : vector<8x32xf32> to vector<8x32xbf16>
    %c0_29 = arith.constant 0 : index
    %c0_30 = arith.constant 0 : index
    %c0_31 = arith.constant 0 : index
    %129 = vector.load %arg8[%c0_29, %c0_30, %c0_31] : memref<1x32x32xbf16, #tpu.memory_space<vmem>>, vector<1x32x32xbf16>
    %130 = vector.shape_cast %129 : vector<1x32x32xbf16> to vector<32x32xbf16>
    %cst_32 = arith.constant dense<0.000000e+00> : vector<8x32xf32>
    %131 = tpu.matmul %128, %130, %cst_32 {dimension_numbers = #tpu.dot_dimension_numbers<[1], [0], [0], [1], [0, 0, 1, 1], [], []>} : vector<8x32xbf16>, vector<32x32xbf16>, vector<8x32xf32> -> vector<8x32xf32>
    %132 = arith.addf %131, %3 : vector<8x32xf32>
    %c0_33 = arith.constant 0 : index
    %c0_34 = arith.constant 0 : index
    %c0_35 = arith.constant 0 : index
    %133 = vector.load %arg9[%c0_33, %c0_34, %c0_35] : memref<1x1x32xbf16, #tpu.memory_space<vmem>>, vector<1x1x32xbf16>
    %134 = vector.shape_cast %133 : vector<1x1x32xbf16> to vector<1x32xbf16>
    %135 = arith.extf %134 : vector<1x32xbf16> to vector<1x32xf32>
    %136 = arith.mulf %132, %132 : vector<8x32xf32>
    %cst_36 = arith.constant dense<0.000000e+00> : vector<8xf32>
    %137 = vector.multi_reduction <add>, %136, %cst_36 [1] : vector<8x32xf32> to vector<8xf32>
    %138 = vector.shape_cast %137 : vector<8xf32> to vector<8x1xf32>
    %cst_37 = arith.constant 3.200000e+01 : f32
    %139 = vector.broadcast %cst_37 : f32 to vector<8x1xf32>
    %140 = arith.divf %138, %139 : vector<8x1xf32>
    %cst_38 = arith.constant 9.99999997E-7 : f32
    %141 = vector.broadcast %cst_38 : f32 to vector<8x1xf32>
    %142 = arith.addf %140, %141 : vector<8x1xf32>
    %143 = math.rsqrt %142 : vector<8x1xf32>
    %144 = vector.broadcast %143 : vector<8x1xf32> to vector<8x32xf32>
    %145 = arith.mulf %132, %144 : vector<8x32xf32>
    %146 = vector.broadcast %135 : vector<1x32xf32> to vector<8x32xf32>
    %147 = arith.mulf %145, %146 : vector<8x32xf32>
    %148 = arith.truncf %147 : vector<8x32xf32> to vector<8x32xbf16>
    %c0_39 = arith.constant 0 : index
    %c0_40 = arith.constant 0 : index
    %c0_41 = arith.constant 0 : index
    %149 = vector.load %arg10[%c0_39, %c0_40, %c0_41] : memref<1x32x128xbf16, #tpu.memory_space<vmem>>, vector<1x32x128xbf16>
    %150 = vector.shape_cast %149 : vector<1x32x128xbf16> to vector<32x128xbf16>
    %cst_42 = arith.constant dense<0.000000e+00> : vector<8x128xf32>
    %151 = tpu.matmul %148, %150, %cst_42 {dimension_numbers = #tpu.dot_dimension_numbers<[1], [0], [0], [1], [0, 0, 1, 1], [], []>} : vector<8x32xbf16>, vector<32x128xbf16>, vector<8x128xf32> -> vector<8x128xf32>
    %152 = vector.extract_strided_slice %151 {offsets = [0, 0], sizes = [8, 64], strides = [1, 1]} : vector<8x128xf32> to vector<8x64xf32>
    %153 = vector.extract_strided_slice %151 {offsets = [0, 64], sizes = [8, 64], strides = [1, 1]} : vector<8x128xf32> to vector<8x64xf32>
    %cst_43 = arith.constant 0.000000e+00 : f32
    %154 = vector.broadcast %cst_43 : f32 to vector<8x64xf32>
    %155 = arith.subf %154, %152 : vector<8x64xf32>
    %156 = math.exp %155 : vector<8x64xf32>
    %cst_44 = arith.constant 1.000000e+00 : f32
    %157 = vector.broadcast %cst_44 : f32 to vector<8x64xf32>
    %158 = arith.addf %157, %156 : vector<8x64xf32>
    %159 = tpu.reciprocal %158 {approx = true} : vector<8x64xf32> -> vector<8x64xf32>
    %160 = arith.mulf %152, %159 : vector<8x64xf32>
    %161 = arith.mulf %160, %153 : vector<8x64xf32>
    %162 = arith.truncf %161 : vector<8x64xf32> to vector<8x64xbf16>
    %c0_45 = arith.constant 0 : index
    %c0_46 = arith.constant 0 : index
    %c0_47 = arith.constant 0 : index
    %163 = vector.load %arg11[%c0_45, %c0_46, %c0_47] : memref<1x64x32xbf16, #tpu.memory_space<vmem>>, vector<1x64x32xbf16>
    %164 = vector.shape_cast %163 : vector<1x64x32xbf16> to vector<64x32xbf16>
    %cst_48 = arith.constant dense<0.000000e+00> : vector<8x32xf32>
    %165 = tpu.matmul %162, %164, %cst_48 {dimension_numbers = #tpu.dot_dimension_numbers<[1], [0], [0], [1], [0, 0, 1, 1], [], []>} : vector<8x64xbf16>, vector<64x32xbf16>, vector<8x32xf32> -> vector<8x32xf32>
    %166 = arith.addf %165, %132 : vector<8x32xf32>
    %c0_49 = arith.constant 0 : index
    %c0_50 = arith.constant 0 : index
    %167 = vector.load %arg16[%c0_49, %c0_50] : memref<8x32xf32, #tpu.memory_space<vmem>>, vector<8x32xf32>
    tpu.vector_store %arg16[%c0_49, %c0_50], %166 {strides = array<i32>} : memref<8x32xf32, #tpu.memory_space<vmem>>, vector<8x32xf32>,
    %c1_i32 = arith.constant 1 : i32
    %168 = arith.cmpi eq, %arg1, %c1_i32 : i32
    %169 = arith.extui %168 : i1 to i32
    %c0_i32_51 = arith.constant 0 : i32
    %170 = arith.cmpi ne, %169, %c0_i32_51 : i32
    scf.if %170 {
      %c0_52 = arith.constant 0 : index
      %c0_53 = arith.constant 0 : index
      %171 = vector.load %arg12[%c0_52, %c0_53] : memref<1x32xbf16, #tpu.memory_space<vmem>>, vector<1x32xbf16>
      %172 = arith.extf %171 : vector<1x32xbf16> to vector<1x32xf32>
      %173 = arith.mulf %166, %166 : vector<8x32xf32>
      %cst_54 = arith.constant dense<0.000000e+00> : vector<8xf32>
      %174 = vector.multi_reduction <add>, %173, %cst_54 [1] : vector<8x32xf32> to vector<8xf32>
      %175 = vector.shape_cast %174 : vector<8xf32> to vector<8x1xf32>
      %cst_55 = arith.constant 3.200000e+01 : f32
      %176 = vector.broadcast %cst_55 : f32 to vector<8x1xf32>
      %177 = arith.divf %175, %176 : vector<8x1xf32>
      %cst_56 = arith.constant 9.99999997E-7 : f32
      %178 = vector.broadcast %cst_56 : f32 to vector<8x1xf32>
      %179 = arith.addf %177, %178 : vector<8x1xf32>
      %180 = math.rsqrt %179 : vector<8x1xf32>
      %181 = vector.broadcast %180 : vector<8x1xf32> to vector<8x32xf32>
      %182 = arith.mulf %166, %181 : vector<8x32xf32>
      %183 = vector.broadcast %172 : vector<1x32xf32> to vector<8x32xf32>
      %184 = arith.mulf %182, %183 : vector<8x32xf32>
      %185 = arith.truncf %184 : vector<8x32xf32> to vector<8x32xbf16>
      %c0_57 = arith.constant 0 : index
      %c0_58 = arith.constant 0 : index
      %186 = vector.load %arg13[%c0_57, %c0_58] : memref<32x64xbf16, #tpu.memory_space<vmem>>, vector<32x64xbf16>
      %cst_59 = arith.constant dense<0.000000e+00> : vector<8x64xf32>
      %187 = tpu.matmul %185, %186, %cst_59 {dimension_numbers = #tpu.dot_dimension_numbers<[1], [0], [0], [1], [0, 0, 1, 1], [], []>} : vector<8x32xbf16>, vector<32x64xbf16>, vector<8x64xf32> -> vector<8x64xf32>
      %188 = arith.truncf %187 : vector<8x64xf32> to vector<8x64xbf16>
      %c0_60 = arith.constant 0 : index
      %c0_61 = arith.constant 0 : index
      %189 = vector.load %arg14[%c0_60, %c0_61] : memref<8x64xbf16, #tpu.memory_space<vmem>>, vector<8x64xbf16>
      tpu.vector_store %arg14[%c0_60, %c0_61], %188 {strides = array<i32>} : memref<8x64xbf16, #tpu.memory_space<vmem>>, vector<8x64xbf16>,
    } else {
    }
    return
  }
  func.func @transform_0(%arg0: i32, %arg1: i32) -> (i32, i32) {
    %c0_i32 = arith.constant 0 : i32
    %c0_i32_0 = arith.constant 0 : i32
    return %arg0, %c0_i32 : i32, i32
  }
  func.func @transform_1(%arg0: i32, %arg1: i32) -> (i32, i32) {
    %c0_i32 = arith.constant 0 : i32
    %c0_i32_0 = arith.constant 0 : i32
    %c0_i32_1 = arith.constant 0 : i32
    return %c0_i32, %c0_i32_0 : i32, i32
  }
  func.func @transform_2(%arg0: i32, %arg1: i32) -> (i32, i32) {
    %c0_i32 = arith.constant 0 : i32
    %c0_i32_0 = arith.constant 0 : i32
    %c0_i32_1 = arith.constant 0 : i32
    return %c0_i32, %c0_i32_0 : i32, i32
  }
  func.func @transform_3(%arg0: i32, %arg1: i32) -> (i32, i32, i32) {
    %c0_i32 = arith.constant 0 : i32
    %c0_i32_0 = arith.constant 0 : i32
    %c0_i32_1 = arith.constant 0 : i32
    return %arg1, %c0_i32, %c0_i32_0 : i32, i32, i32
  }
  func.func @transform_4(%arg0: i32, %arg1: i32) -> (i32, i32, i32) {
    %c0_i32 = arith.constant 0 : i32
    %c0_i32_0 = arith.constant 0 : i32
    %c0_i32_1 = arith.constant 0 : i32
    return %arg1, %c0_i32, %c0_i32_0 : i32, i32, i32
  }
  func.func @transform_5(%arg0: i32, %arg1: i32) -> (i32, i32, i32) {
    %c0_i32 = arith.constant 0 : i32
    %c0_i32_0 = arith.constant 0 : i32
    %c0_i32_1 = arith.constant 0 : i32
    return %arg1, %c0_i32, %c0_i32_0 : i32, i32, i32
  }
  func.func @transform_6(%arg0: i32, %arg1: i32) -> (i32, i32, i32) {
    %c0_i32 = arith.constant 0 : i32
    %c0_i32_0 = arith.constant 0 : i32
    %c0_i32_1 = arith.constant 0 : i32
    return %arg1, %c0_i32, %c0_i32_0 : i32, i32, i32
  }
  func.func @transform_7(%arg0: i32, %arg1: i32) -> (i32, i32, i32) {
    %c0_i32 = arith.constant 0 : i32
    %c0_i32_0 = arith.constant 0 : i32
    %c0_i32_1 = arith.constant 0 : i32
    return %arg1, %c0_i32, %c0_i32_0 : i32, i32, i32
  }
  func.func @transform_8(%arg0: i32, %arg1: i32) -> (i32, i32, i32) {
    %c0_i32 = arith.constant 0 : i32
    %c0_i32_0 = arith.constant 0 : i32
    %c0_i32_1 = arith.constant 0 : i32
    return %arg1, %c0_i32, %c0_i32_0 : i32, i32, i32
  }
  func.func @transform_9(%arg0: i32, %arg1: i32) -> (i32, i32, i32) {
    %c0_i32 = arith.constant 0 : i32
    %c0_i32_0 = arith.constant 0 : i32
    %c0_i32_1 = arith.constant 0 : i32
    return %arg1, %c0_i32, %c0_i32_0 : i32, i32, i32
  }
  func.func @transform_10(%arg0: i32, %arg1: i32) -> (i32, i32) {
    %c0_i32 = arith.constant 0 : i32
    %c0_i32_0 = arith.constant 0 : i32
    %c0_i32_1 = arith.constant 0 : i32
    return %c0_i32, %c0_i32_0 : i32, i32
  }
  func.func @transform_11(%arg0: i32, %arg1: i32) -> (i32, i32) {
    %c0_i32 = arith.constant 0 : i32
    %c0_i32_0 = arith.constant 0 : i32
    %c0_i32_1 = arith.constant 0 : i32
    return %c0_i32, %c0_i32_0 : i32, i32
  }
  func.func @transform_12(%arg0: i32, %arg1: i32) -> (i32, i32) {
    %c0_i32 = arith.constant 0 : i32
    %c0_i32_0 = arith.constant 0 : i32
    return %arg0, %c0_i32 : i32, i32
  }
  func.func @transform_13(%arg0: i32, %arg1: i32) -> (i32, i32, i32) {
    %c0_i32 = arith.constant 0 : i32
    %c0_i32_0 = arith.constant 0 : i32
    return %arg1, %arg0, %c0_i32 : i32, i32, i32
  }
}

</mosaic_0001>

<llo_original>
// kernel: qwen2_forward.1
$region0: #{qwen2_forward.1}
  #allocation0 [shape = 'u32[]', space=smem, size = 0x4, offset = 0x4, fixed_abs, tag = 'smem constant byte address 0x4 - core index']
  #allocation1 [shape = 'u32[144,128]{1,0:T(1,128)}', space=vmem, size = 0x12000, scoped, tag = 'internal scratch']
  #allocation2 [shape = 'f32[8,32]{1,0:T(8,128)}', space=vmem, size = 0x1000, scoped, tag = 'scratch operand']
  %s0 = inlined_call_operand.vmem [shape: bf16[16,32], index: 0, kind: input, shape index: {}]
  %s1 = inlined_call_operand.vmem [shape: f32[8,8], index: 1, kind: input, shape index: {}]
  %s2 = inlined_call_operand.vmem [shape: f32[8,8], index: 2, kind: input, shape index: {}]
  %s3 = inlined_call_operand.vmem [shape: bf16[2,1,32], index: 3, kind: input, shape index: {}]
  %s4 = inlined_call_operand.vmem [shape: bf16[2,32,64], index: 4, kind: input, shape index: {}]
  %s5 = inlined_call_operand.vmem [shape: bf16[2,1,64], index: 5, kind: input, shape index: {}]
  %s6 = inlined_call_operand.vmem [shape: bf16[2,32,32], index: 6, kind: input, shape index: {}]
  %s7 = inlined_call_operand.vmem [shape: bf16[2,1,32], index: 7, kind: input, shape index: {}]
  %s8 = inlined_call_operand.vmem [shape: bf16[2,32,128], index: 8, kind: input, shape index: {}]
  %s9 = inlined_call_operand.vmem [shape: bf16[2,64,32], index: 9, kind: input, shape index: {}]
  %s10 = inlined_call_operand.vmem [shape: bf16[1,32], index: 10, kind: input, shape index: {}]
  %s11 = inlined_call_operand.vmem [shape: bf16[32,64], index: 11, kind: input, shape index: {}]
  %s12 = inlined_call_operand.hbm [shape: bf16[16,64], index: 12, kind: output, shape index: {0}]
  %s13 = inlined_call_operand.vmem [shape: bf16[2,16,32], index: 13, kind: output, shape index: {1}]
  %14 = xla_tuple %s12, %s13
  %s15 = sld [smem:[#allocation0]]
  $region97: #{qwen2_forward.1} parent=0
    _
  %s17 = ssub.s32 1, %s15
  %s18 = scalar_select 0, %s17, %s15
  $region1: #{qwen2_forward.1} parent=0
    #allocation3 [shape = 'u8[4096]{0}', space=vmem, size = 0x1000, scoped, tag = 'output window, operand 0']
    #allocation4 [shape = 's32[2]{0}', space=sflag, size = 0x8, scoped, tag = 'scoped memory for qwen2_forward.1']
    %19 = vsyncpa [#allocation4], 0
    %s20 = scalar_lea.sflag [#allocation4], 1
    %21 = vsyncpa %s20, 0
    loop: start=0, step=1, limit=6
    $region2: #{qwen2_forward.1} parent=1 // loop_pre_header
      _
    $region3: #{qwen2_forward.1} parent=1 // loop_header
      %s23 = sphi 0, %s27
      %p24 = scmp.ge.s32.totalorder %s23, 6
      %s30 = sphi 0, %s42
      %s31 = sphi 0, %s38
      %s32 = sphi 0, %s30
      %s33 = sphi 0, %s31
      %s34 = sphi 0, %s32
      %s35 = sphi 0, %s33
      %s45 = sphi 0, %s47
      %s48 = sphi 0, %s45
      %s49 = sphi 0, %s48
      %s65 = sphi 0, %s49
      %s69 = sphi 0, %s69
      %s71 = sphi 0, %s69
      %s72 = sphi 0, %s71
      %s86 = sphi 0, %s72
      %s90 = sphi 0, %s90
      %s92 = sphi 0, %s90
      %s93 = sphi 0, %s92
      %s107 = sphi 0, %s93
      %s113 = sphi 0, %s115
      %s116 = sphi 0, %s113
      %s117 = sphi 0, %s116
      %s133 = sphi 0, %s117
      %s139 = sphi 0, %s141
      %s142 = sphi 0, %s139
      %s143 = sphi 0, %s142
      %s159 = sphi 0, %s143
      %s165 = sphi 0, %s167
      %s168 = sphi 0, %s165
      %s169 = sphi 0, %s168
      %s185 = sphi 0, %s169
      %s191 = sphi 0, %s193
      %s194 = sphi 0, %s191
      %s195 = sphi 0, %s194
      %s211 = sphi 0, %s195
      %s217 = sphi 0, %s219
      %s220 = sphi 0, %s217
      %s221 = sphi 0, %s220
      %s237 = sphi 0, %s221
      %s243 = sphi 0, %s245
      %s246 = sphi 0, %s243
      %s247 = sphi 0, %s246
      %s263 = sphi 0, %s247
      %s269 = sphi 0, %s271
      %s272 = sphi 0, %s269
      %s273 = sphi 0, %s272
      %s289 = sphi 0, %s273
      %s293 = sphi 0, %s293
      %s295 = sphi 0, %s293
      %s296 = sphi 0, %s295
      %s310 = sphi 0, %s296
      %s314 = sphi 0, %s314
      %s316 = sphi 0, %s314
      %s317 = sphi 0, %s316
      %s331 = sphi 0, %s317
      %s337 = sphi 0, %s339
      %s340 = sphi 0, %s337
      %s341 = sphi 0, %s340
      %s357 = sphi 0, %s341
      %s365 = sphi 0, %s367
      %s368 = sphi 0, %s365
      %s369 = sphi 0, %s368
      %s385 = sphi 0, %s369
    $region4: #{qwen2_forward.1} parent=1 // loop_header_branch
      %26 = sbr.rel (%p24) target = $region8
    $region5: #{qwen2_forward.1} parent=1 // loop_body
      %s28 = ssub.s32 %s23, 1
      %s29 = ssub.s32 %s23, 2
      %s36 = sadd.s32 1, %s31
      %p37 = scmp.ge.s32.totalorder %s36, 2
      %s38 = scalar_select %p37, 0, %s36
      %s39 = sadd.s32 1, %s30
      %s40 = scalar_select %p37, %s39, %s30
      %p41 = scmp.ge.s32.totalorder %s40, 2
      %s42 = scalar_select %p41, 0, %s40
      %s43 = ssub.s32 %s30, %s42
      %p44 = scmp.eq.s32.totalorder %s43, 0
      %s46 = sadd.s32 %s45, 1
      %s47 = scalar_select %p44, %s45, %s46
      %p50 = pneg %p44
      %p51 = scmp.eq.s32.totalorder %s23, 3
      %p52 = por %p50, %p51
      %p53 = scmp.ne.s32.totalorder %s45, %s48
      %p54 = scmp.eq.s32.totalorder %s23, 0
      %p55 = por %p53, %p54
      %p56 = scmp.ne.s32.totalorder %s45, %s48
      %p57 = scmp.eq.s32.totalorder %s28, 3
      %p58 = por %p56, %p57
      %p59 = scmp.ne.s32.totalorder %s48, %s49
      %p60 = scmp.eq.s32.totalorder %s28, 0
      %p61 = por %p59, %p60
      %p62 = scmp.ne.s32.totalorder %s48, %s49
      %p63 = scmp.eq.s32.totalorder %s29, 3
      %p64 = por %p62, %p63
      %p66 = scmp.ne.s32.totalorder %s49, %s65
      %p67 = scmp.eq.s32.totalorder %s29, 0
      %p68 = por %p66, %p67
      %s70 = sadd.s32 %s69, 1
      %p73 = scmp.eq.s32.totalorder %s23, 3
      %p74 = scmp.ne.s32.totalorder %s69, %s71
      %p75 = scmp.eq.s32.totalorder %s23, 0
      %p76 = por %p74, %p75
      %p77 = scmp.ne.s32.totalorder %s69, %s71
      %p78 = scmp.eq.s32.totalorder %s28, 3
      %p79 = por %p77, %p78
      %p80 = scmp.ne.s32.totalorder %s71, %s72
      %p81 = scmp.eq.s32.totalorder %s28, 0
      %p82 = por %p80, %p81
      %p83 = scmp.ne.s32.totalorder %s71, %s72
      %p84 = scmp.eq.s32.totalorder %s29, 3
      %p85 = por %p83, %p84
      %p87 = scmp.ne.s32.totalorder %s72, %s86
      %p88 = scmp.eq.s32.totalorder %s29, 0
      %p89 = por %p87, %p88
      %s91 = sadd.s32 %s90, 1
      %p94 = scmp.eq.s32.totalorder %s23, 3
      %p95 = scmp.ne.s32.totalorder %s90, %s92
      %p96 = scmp.eq.s32.totalorder %s23, 0
      %p97 = por %p95, %p96
      %p98 = scmp.ne.s32.totalorder %s90, %s92
      %p99 = scmp.eq.s32.totalorder %s28, 3
      %p100 = por %p98, %p99
      %p101 = scmp.ne.s32.totalorder %s92, %s93
      %p102 = scmp.eq.s32.totalorder %s28, 0
      %p103 = por %p101, %p102
      %p104 = scmp.ne.s32.totalorder %s92, %s93
      %p105 = scmp.eq.s32.totalorder %s29, 3
      %p106 = por %p104, %p105
      %p108 = scmp.ne.s32.totalorder %s93, %s107
      %p109 = scmp.eq.s32.totalorder %s29, 0
      %p110 = por %p108, %p109
      %s111 = ssub.s32 %s31, %s38
      %p112 = scmp.eq.s32.totalorder %s111, 0
      %s114 = sadd.s32 %s113, 1
      %s115 = scalar_select %p112, %s113, %s114
      %p118 = pneg %p112
      %p119 = scmp.eq.s32.totalorder %s23, 3
      %p120 = por %p118, %p119
      %p121 = scmp.ne.s32.totalorder %s113, %s116
      %p122 = scmp.eq.s32.totalorder %s23, 0
      %p123 = por %p121, %p122
      %p124 = scmp.ne.s32.totalorder %s113, %s116
      %p125 = scmp.eq.s32.totalorder %s28, 3
      %p126 = por %p124, %p125
      %p127 = scmp.ne.s32.totalorder %s116, %s117
      %p128 = scmp.eq.s32.totalorder %s28, 0
      %p129 = por %p127, %p128
      %p130 = scmp.ne.s32.totalorder %s116, %s117
      %p131 = scmp.eq.s32.totalorder %s29, 3
      %p132 = por %p130, %p131
      %p134 = scmp.ne.s32.totalorder %s117, %s133
      %p135 = scmp.eq.s32.totalorder %s29, 0
      %p136 = por %p134, %p135
      %s137 = ssub.s32 %s31, %s38
      %p138 = scmp.eq.s32.totalorder %s137, 0
      %s140 = sadd.s32 %s139, 1
      %s141 = scalar_select %p138, %s139, %s140
      %p144 = pneg %p138
      %p145 = scmp.eq.s32.totalorder %s23, 3
      %p146 = por %p144, %p145
      %p147 = scmp.ne.s32.totalorder %s139, %s142
      %p148 = scmp.eq.s32.totalorder %s23, 0
      %p149 = por %p147, %p148
      %p150 = scmp.ne.s32.totalorder %s139, %s142
      %p151 = scmp.eq.s32.totalorder %s28, 3
      %p152 = por %p150, %p151
      %p153 = scmp.ne.s32.totalorder %s142, %s143
      %p154 = scmp.eq.s32.totalorder %s28, 0
      %p155 = por %p153, %p154
      %p156 = scmp.ne.s32.totalorder %s142, %s143
      %p157 = scmp.eq.s32.totalorder %s29, 3
      %p158 = por %p156, %p157
      %p160 = scmp.ne.s32.totalorder %s143, %s159
      %p161 = scmp.eq.s32.totalorder %s29, 0
      %p162 = por %p160, %p161
      %s163 = ssub.s32 %s31, %s38
      %p164 = scmp.eq.s32.totalorder %s163, 0
      %s166 = sadd.s32 %s165, 1
      %s167 = scalar_select %p164, %s165, %s166
      %p170 = pneg %p164
      %p171 = scmp.eq.s32.totalorder %s23, 3
      %p172 = por %p170, %p171
      %p173 = scmp.ne.s32.totalorder %s165, %s168
      %p174 = scmp.eq.s32.totalorder %s23, 0
      %p175 = por %p173, %p174
      %p176 = scmp.ne.s32.totalorder %s165, %s168
      %p177 = scmp.eq.s32.totalorder %s28, 3
      %p178 = por %p176, %p177
      %p179 = scmp.ne.s32.totalorder %s168, %s169
      %p180 = scmp.eq.s32.totalorder %s28, 0
      %p181 = por %p179, %p180
      %p182 = scmp.ne.s32.totalorder %s168, %s169
      %p183 = scmp.eq.s32.totalorder %s29, 3
      %p184 = por %p182, %p183
      %p186 = scmp.ne.s32.totalorder %s169, %s185
      %p187 = scmp.eq.s32.totalorder %s29, 0
      %p188 = por %p186, %p187
      %s189 = ssub.s32 %s31, %s38
      %p190 = scmp.eq.s32.totalorder %s189, 0
      %s192 = sadd.s32 %s191, 1
      %s193 = scalar_select %p190, %s191, %s192
      %p196 = pneg %p190
      %p197 = scmp.eq.s32.totalorder %s23, 3
      %p198 = por %p196, %p197
      %p199 = scmp.ne.s32.totalorder %s191, %s194
      %p200 = scmp.eq.s32.totalorder %s23, 0
      %p201 = por %p199, %p200
      %p202 = scmp.ne.s32.totalorder %s191, %s194
      %p203 = scmp.eq.s32.totalorder %s28, 3
      %p204 = por %p202, %p203
      %p205 = scmp.ne.s32.totalorder %s194, %s195
      %p206 = scmp.eq.s32.totalorder %s28, 0
      %p207 = por %p205, %p206
      %p208 = scmp.ne.s32.totalorder %s194, %s195
      %p209 = scmp.eq.s32.totalorder %s29, 3
      %p210 = por %p208, %p209
      %p212 = scmp.ne.s32.totalorder %s195, %s211
      %p213 = scmp.eq.s32.totalorder %s29, 0
      %p214 = por %p212, %p213
      %s215 = ssub.s32 %s31, %s38
      %p216 = scmp.eq.s32.totalorder %s215, 0
      %s218 = sadd.s32 %s217, 1
      %s219 = scalar_select %p216, %s217, %s218
      %p222 = pneg %p216
      %p223 = scmp.eq.s32.totalorder %s23, 3
      %p224 = por %p222, %p223
      %p225 = scmp.ne.s32.totalorder %s217, %s220
      %p226 = scmp.eq.s32.totalorder %s23, 0
      %p227 = por %p225, %p226
      %p228 = scmp.ne.s32.totalorder %s217, %s220
      %p229 = scmp.eq.s32.totalorder %s28, 3
      %p230 = por %p228, %p229
      %p231 = scmp.ne.s32.totalorder %s220, %s221
      %p232 = scmp.eq.s32.totalorder %s28, 0
      %p233 = por %p231, %p232
      %p234 = scmp.ne.s32.totalorder %s220, %s221
      %p235 = scmp.eq.s32.totalorder %s29, 3
      %p236 = por %p234, %p235
      %p238 = scmp.ne.s32.totalorder %s221, %s237
      %p239 = scmp.eq.s32.totalorder %s29, 0
      %p240 = por %p238, %p239
      %s241 = ssub.s32 %s31, %s38
      %p242 = scmp.eq.s32.totalorder %s241, 0
      %s244 = sadd.s32 %s243, 1
      %s245 = scalar_select %p242, %s243, %s244
      %p248 = pneg %p242
      %p249 = scmp.eq.s32.totalorder %s23, 3
      %p250 = por %p248, %p249
      %p251 = scmp.ne.s32.totalorder %s243, %s246
      %p252 = scmp.eq.s32.totalorder %s23, 0
      %p253 = por %p251, %p252
      %p254 = scmp.ne.s32.totalorder %s243, %s246
      %p255 = scmp.eq.s32.totalorder %s28, 3
      %p256 = por %p254, %p255
      %p257 = scmp.ne.s32.totalorder %s246, %s247
      %p258 = scmp.eq.s32.totalorder %s28, 0
      %p259 = por %p257, %p258
      %p260 = scmp.ne.s32.totalorder %s246, %s247
      %p261 = scmp.eq.s32.totalorder %s29, 3
      %p262 = por %p260, %p261
      %p264 = scmp.ne.s32.totalorder %s247, %s263
      %p265 = scmp.eq.s32.totalorder %s29, 0
      %p266 = por %p264, %p265
      %s267 = ssub.s32 %s31, %s38
      %p268 = scmp.eq.s32.totalorder %s267, 0
      %s270 = sadd.s32 %s269, 1
      %s271 = scalar_select %p268, %s269, %s270
      %p274 = pneg %p268
      %p275 = scmp.eq.s32.totalorder %s23, 3
      %p276 = por %p274, %p275
      %p277 = scmp.ne.s32.totalorder %s269, %s272
      %p278 = scmp.eq.s32.totalorder %s23, 0
      %p279 = por %p277, %p278
      %p280 = scmp.ne.s32.totalorder %s269, %s272
      %p281 = scmp.eq.s32.totalorder %s28, 3
      %p282 = por %p280, %p281
      %p283 = scmp.ne.s32.totalorder %s272, %s273
      %p284 = scmp.eq.s32.totalorder %s28, 0
      %p285 = por %p283, %p284
      %p286 = scmp.ne.s32.totalorder %s272, %s273
      %p287 = scmp.eq.s32.totalorder %s29, 3
      %p288 = por %p286, %p287
      %p290 = scmp.ne.s32.totalorder %s273, %s289
      %p291 = scmp.eq.s32.totalorder %s29, 0
      %p292 = por %p290, %p291
      %s294 = sadd.s32 %s293, 1
      %p297 = scmp.eq.s32.totalorder %s23, 3
      %p298 = scmp.ne.s32.totalorder %s293, %s295
      %p299 = scmp.eq.s32.totalorder %s23, 0
      %p300 = por %p298, %p299
      %p301 = scmp.ne.s32.totalorder %s293, %s295
      %p302 = scmp.eq.s32.totalorder %s28, 3
      %p303 = por %p301, %p302
      %p304 = scmp.ne.s32.totalorder %s295, %s296
      %p305 = scmp.eq.s32.totalorder %s28, 0
      %p306 = por %p304, %p305
      %p307 = scmp.ne.s32.totalorder %s295, %s296
      %p308 = scmp.eq.s32.totalorder %s29, 3
      %p309 = por %p307, %p308
      %p311 = scmp.ne.s32.totalorder %s296, %s310
      %p312 = scmp.eq.s32.totalorder %s29, 0
      %p313 = por %p311, %p312
      %s315 = sadd.s32 %s314, 1
      %p318 = scmp.eq.s32.totalorder %s23, 3
      %p319 = scmp.ne.s32.totalorder %s314, %s316
      %p320 = scmp.eq.s32.totalorder %s23, 0
      %p321 = por %p319, %p320
      %p322 = scmp.ne.s32.totalorder %s314, %s316
      %p323 = scmp.eq.s32.totalorder %s28, 3
      %p324 = por %p322, %p323
      %p325 = scmp.ne.s32.totalorder %s316, %s317
      %p326 = scmp.eq.s32.totalorder %s28, 0
      %p327 = por %p325, %p326
      %p328 = scmp.ne.s32.totalorder %s316, %s317
      %p329 = scmp.eq.s32.totalorder %s29, 3
      %p330 = por %p328, %p329
      %p332 = scmp.ne.s32.totalorder %s317, %s331
      %p333 = scmp.eq.s32.totalorder %s29, 0
      %p334 = por %p332, %p333
      %s335 = ssub.s32 %s30, %s42
      %p336 = scmp.eq.s32.totalorder %s335, 0
      %s338 = sadd.s32 %s337, 1
      %s339 = scalar_select %p336, %s337, %s338
      %p342 = pneg %p336
      %p343 = scmp.eq.s32.totalorder %s23, 3
      %p344 = por %p342, %p343
      %p345 = scmp.ne.s32.totalorder %s337, %s340
      %p346 = scmp.eq.s32.totalorder %s23, 0
      %p347 = por %p345, %p346
      %p348 = scmp.ne.s32.totalorder %s337, %s340
      %p349 = scmp.eq.s32.totalorder %s28, 3
      %p350 = por %p348, %p349
      %p351 = scmp.ne.s32.totalorder %s340, %s341
      %p352 = scmp.eq.s32.totalorder %s28, 0
      %p353 = por %p351, %p352
      %p354 = scmp.ne.s32.totalorder %s340, %s341
      %p355 = scmp.eq.s32.totalorder %s29, 3
      %p356 = por %p354, %p355
      %p358 = scmp.ne.s32.totalorder %s341, %s357
      %p359 = scmp.eq.s32.totalorder %s29, 0
      %p360 = por %p358, %p359
      %s361 = ssub.s32 %s31, %s38
      %s362 = ssub.s32 %s30, %s42
      %s363 = sor.u32 %s361, %s362
      %p364 = scmp.eq.s32.totalorder %s363, 0
      %s366 = sadd.s32 %s365, 1
      %s367 = scalar_select %p364, %s365, %s366
      %p370 = pneg %p364
      %p371 = scmp.eq.s32.totalorder %s23, 3
      %p372 = por %p370, %p371
      %p373 = scmp.ne.s32.totalorder %s365, %s368
      %p374 = scmp.eq.s32.totalorder %s23, 0
      %p375 = por %p373, %p374
      %p376 = scmp.ne.s32.totalorder %s365, %s368
      %p377 = scmp.eq.s32.totalorder %s28, 3
      %p378 = por %p376, %p377
      %p379 = scmp.ne.s32.totalorder %s368, %s369
      %p380 = scmp.eq.s32.totalorder %s28, 0
      %p381 = por %p379, %p380
      %p382 = scmp.ne.s32.totalorder %s368, %s369
      %p383 = scmp.eq.s32.totalorder %s29, 3
      %p384 = por %p382, %p383
      %p386 = scmp.ne.s32.totalorder %s369, %s385
      %p387 = scmp.eq.s32.totalorder %s29, 0
      %p388 = por %p386, %p387
      %p389 = scmp.le.s32.totalorder 1, %s23
      %p390 = scmp.lt.s32.totalorder %s23, 5
      %p391 = pnand %p389, %p390
      %p392 = pneg %p391
      // Predicated region
      $region9: #{qwen2_forward.1} parent=5 // pred_check
        _
      $region10: #{qwen2_forward.1} parent=5 // pred_check_branch
        %394 = sbr.rel (%p391) target = $region12
      $region11: #{qwen2_forward.1} parent=5 // pred_region
        %s395 = ssub.s32 %s23, 1
        // Predicated region
        $region13: #{qwen2_forward.1} parent=11 // pred_check
          %p396 = pneg %p82
        $region14: #{qwen2_forward.1} parent=11 // pred_check_branch
          %398 = sbr.rel (%p396) target = $region16
        $region15: #{qwen2_forward.1} parent=11 // pred_region
          _
        $region16: #{qwen2_forward.1} parent=11 // pred_fallthru
          _
        // Predicated region
        $region17: #{qwen2_forward.1} parent=11 // pred_check
          %p399 = pneg %p103
        $region18: #{qwen2_forward.1} parent=11 // pred_check_branch
          %401 = sbr.rel (%p399) target = $region20
        $region19: #{qwen2_forward.1} parent=11 // pred_region
          _
        $region20: #{qwen2_forward.1} parent=11 // pred_fallthru
          _
        // Predicated region
        $region21: #{qwen2_forward.1} parent=11 // pred_check
          %p402 = pneg %p306
        $region22: #{qwen2_forward.1} parent=11 // pred_check_branch
          %404 = sbr.rel (%p402) target = $region24
        $region23: #{qwen2_forward.1} parent=11 // pred_region
          _
        $region24: #{qwen2_forward.1} parent=11 // pred_fallthru
          _
        // Predicated region
        $region25: #{qwen2_forward.1} parent=11 // pred_check
          %p405 = pneg %p327
        $region26: #{qwen2_forward.1} parent=11 // pred_check_branch
          %407 = sbr.rel (%p405) target = $region28
        $region27: #{qwen2_forward.1} parent=11 // pred_region
          _
        $region28: #{qwen2_forward.1} parent=11 // pred_fallthru
          _
      $region12: #{qwen2_forward.1} parent=5 // pred_fallthru
        _
      %p408 = scmp.lt.s32.totalorder %s23, 4
      // Predicated region
      $region29: #{qwen2_forward.1} parent=5 // pred_check
        %p409 = pneg %p408
      $region30: #{qwen2_forward.1} parent=5 // pred_check_branch
        %411 = sbr.rel (%p409) target = $region32
      $region31: #{qwen2_forward.1} parent=5 // pred_region
        // Predicated region
        $region33: #{qwen2_forward.1} parent=31 // pred_check
          %p412 = pneg %p55
        $region34: #{qwen2_forward.1} parent=31 // pred_check_branch
          %414 = sbr.rel (%p412) target = $region36
        $region35: #{qwen2_forward.1} parent=31 // pred_region
          %p415 = scmp.lt.s32.totalorder %s30, 1
          %s416 = scalar_select %p415, %s30, 1
          %s417 = smul.addr %s416, 4
          %s418 = scalar_lea.vmem %s0, %s417
        $region36: #{qwen2_forward.1} parent=31 // pred_fallthru
          _
        // Predicated region
        $region37: #{qwen2_forward.1} parent=31 // pred_check
          %p419 = pneg %p123
        $region38: #{qwen2_forward.1} parent=31 // pred_check_branch
          %421 = sbr.rel (%p419) target = $region40
        $region39: #{qwen2_forward.1} parent=31 // pred_region
          %p422 = scmp.lt.s32.totalorder %s31, 1
          %s423 = scalar_select %p422, %s31, 1
          %s424 = scalar_lea.vmem %s3, %s423
        $region40: #{qwen2_forward.1} parent=31 // pred_fallthru
          _
        // Predicated region
        $region41: #{qwen2_forward.1} parent=31 // pred_check
          %p425 = pneg %p149
        $region42: #{qwen2_forward.1} parent=31 // pred_check_branch
          %427 = sbr.rel (%p425) target = $region44
        $region43: #{qwen2_forward.1} parent=31 // pred_region
          %p428 = scmp.lt.s32.totalorder %s31, 1
          %s429 = scalar_select %p428, %s31, 1
          %s430 = smul.addr %s429, 4
          %s431 = smul.addr %s430, 4
          %s432 = scalar_lea.vmem %s4, %s431
        $region44: #{qwen2_forward.1} parent=31 // pred_fallthru
          _
        // Predicated region
        $region45: #{qwen2_forward.1} parent=31 // pred_check
          %p433 = pneg %p175
        $region46: #{qwen2_forward.1} parent=31 // pred_check_branch
          %435 = sbr.rel (%p433) target = $region48
        $region47: #{qwen2_forward.1} parent=31 // pred_region
          %p436 = scmp.lt.s32.totalorder %s31, 1
          %s437 = scalar_select %p436, %s31, 1
          %s438 = scalar_lea.vmem %s5, %s437
        $region48: #{qwen2_forward.1} parent=31 // pred_fallthru
          _
        // Predicated region
        $region49: #{qwen2_forward.1} parent=31 // pred_check
          %p439 = pneg %p201
        $region50: #{qwen2_forward.1} parent=31 // pred_check_branch
          %441 = sbr.rel (%p439) target = $region52
        $region51: #{qwen2_forward.1} parent=31 // pred_region
          %p442 = scmp.lt.s32.totalorder %s31, 1
          %s443 = scalar_select %p442, %s31, 1
          %s444 = smul.addr %s443, 4
          %s445 = smul.addr %s444, 4
          %s446 = scalar_lea.vmem %s6, %s445
        $region52: #{qwen2_forward.1} parent=31 // pred_fallthru
          _
        // Predicated region
        $region53: #{qwen2_forward.1} parent=31 // pred_check
          %p447 = pneg %p227
        $region54: #{qwen2_forward.1} parent=31 // pred_check_branch
          %449 = sbr.rel (%p447) target = $region56
        $region55: #{qwen2_forward.1} parent=31 // pred_region
          %p450 = scmp.lt.s32.totalorder %s31, 1
          %s451 = scalar_select %p450, %s31, 1
          %s452 = scalar_lea.vmem %s7, %s451
        $region56: #{qwen2_forward.1} parent=31 // pred_fallthru
          _
        // Predicated region
        $region57: #{qwen2_forward.1} parent=31 // pred_check
          %p453 = pneg %p253
        $region58: #{qwen2_forward.1} parent=31 // pred_check_branch
          %455 = sbr.rel (%p453) target = $region60
        $region59: #{qwen2_forward.1} parent=31 // pred_region
          %p456 = scmp.lt.s32.totalorder %s31, 1
          %s457 = scalar_select %p456, %s31, 1
          %s458 = smul.addr %s457, 4
          %s459 = smul.addr %s458, 4
          %s460 = scalar_lea.vmem %s8, %s459
        $region60: #{qwen2_forward.1} parent=31 // pred_fallthru
          _
        // Predicated region
        $region61: #{qwen2_forward.1} parent=31 // pred_check
          %p461 = pneg %p279
        $region62: #{qwen2_forward.1} parent=31 // pred_check_branch
          %463 = sbr.rel (%p461) target = $region64
        $region63: #{qwen2_forward.1} parent=31 // pred_region
          %p464 = scmp.lt.s32.totalorder %s31, 1
          %s465 = scalar_select %p464, %s31, 1
          %s466 = smul.addr %s465, 8
          %s467 = smul.addr %s466, 4
          %s468 = scalar_lea.vmem %s9, %s467
        $region64: #{qwen2_forward.1} parent=31 // pred_fallthru
          _
      $region32: #{qwen2_forward.1} parent=5 // pred_fallthru
        _
      %p469 = scmp.le.s32.totalorder 1, %s23
      %p470 = scmp.lt.s32.totalorder %s23, 5
      %p471 = pnand %p469, %p470
      %p472 = pneg %p471
      // Predicated region
      $region65: #{qwen2_forward.1} parent=5 // pred_check
        _
      $region66: #{qwen2_forward.1} parent=5 // pred_check_branch
        %474 = sbr.rel (%p471) target = $region68
      $region67: #{qwen2_forward.1} parent=5 // pred_region
        %s475 = ssub.s32 %s23, 1
        %p476 = scmp.lt.s32.totalorder %s32, 1
        %s477 = scalar_select %p476, %s32, 1
        %s478 = smul.addr %s477, 4
        %s479 = scalar_lea.vmem %s0, %s478
        %p480 = pneg %p61
        %p481 = pneg %p58
        %p482 = pneg %p82
        %p483 = pneg %p79
        %p484 = pneg %p103
        %p485 = pneg %p100
        %p486 = scmp.lt.s32.totalorder %s33, 1
        %s487 = scalar_select %p486, %s33, 1
        %s488 = scalar_lea.vmem %s3, %s487
        %p489 = pneg %p129
        %p490 = pneg %p126
        %p491 = scmp.lt.s32.totalorder %s33, 1
        %s492 = scalar_select %p491, %s33, 1
        %s493 = smul.addr %s492, 4
        %s494 = smul.addr %s493, 4
        %s495 = scalar_lea.vmem %s4, %s494
        %p496 = pneg %p155
        %p497 = pneg %p152
        %p498 = scmp.lt.s32.totalorder %s33, 1
        %s499 = scalar_select %p498, %s33, 1
        %s500 = scalar_lea.vmem %s5, %s499
        %p501 = pneg %p181
        %p502 = pneg %p178
        %p503 = scmp.lt.s32.totalorder %s33, 1
        %s504 = scalar_select %p503, %s33, 1
        %s505 = smul.addr %s504, 4
        %s506 = smul.addr %s505, 4
        %s507 = scalar_lea.vmem %s6, %s506
        %p508 = pneg %p207
        %p509 = pneg %p204
        %p510 = scmp.lt.s32.totalorder %s33, 1
        %s511 = scalar_select %p510, %s33, 1
        %s512 = scalar_lea.vmem %s7, %s511
        %p513 = pneg %p233
        %p514 = pneg %p230
        %p515 = scmp.lt.s32.totalorder %s33, 1
        %s516 = scalar_select %p515, %s33, 1
        %s517 = smul.addr %s516, 4
        %s518 = smul.addr %s517, 4
        %s519 = scalar_lea.vmem %s8, %s518
        %p520 = pneg %p259
        %p521 = pneg %p256
        %p522 = scmp.lt.s32.totalorder %s33, 1
        %s523 = scalar_select %p522, %s33, 1
        %s524 = smul.addr %s523, 8
        %s525 = smul.addr %s524, 4
        %s526 = scalar_lea.vmem %s9, %s525
        %p527 = pneg %p285
        %p528 = pneg %p282
        %p529 = pneg %p306
        %p530 = pneg %p303
        %p531 = pneg %p327
        %p532 = pneg %p324
        %p533 = pneg %p353
        %p534 = pneg %p350
        %s535 = sand.u32 %s340, 1
        %s536 = scalar_lea.sflag [#allocation4], %s535
        %s537 = sand.u32 %s340, 1
        %s538 = smul.addr %s537, 4
        %s539 = scalar_lea.vmem [#allocation3], %s538
        %p540 = pneg %p381
        %p541 = pneg %p378
        %p542 = scmp.lt.s32.totalorder %s33, 1
        %s543 = scalar_select %p542, %s33, 1
        %p544 = scmp.lt.s32.totalorder %s32, 1
        %s545 = scalar_select %p544, %s32, 1
        %s546 = smul.addr %s543, 2
        %s547 = sadd.s32 %s545, %s546
        %s548 = smul.addr %s547, 4
        %s549 = scalar_lea.vmem %s13, %s548
        %p550 = scmp.lt.s32.totalorder %s32, 1
        %s551 = scalar_select %p550, %s32, 1
        %s552 = smul.addr %s551, 4
        %s553 = scalar_lea.vmem %s0, %s552
        %p554 = scmp.lt.s32.totalorder %s33, 1
        %s555 = scalar_select %p554, %s33, 1
        %s556 = scalar_lea.vmem %s3, %s555
        %p557 = scmp.lt.s32.totalorder %s33, 1
        %s558 = scalar_select %p557, %s33, 1
        %s559 = smul.addr %s558, 4
        %s560 = smul.addr %s559, 4
        %s561 = scalar_lea.vmem %s4, %s560
        %p562 = scmp.lt.s32.totalorder %s33, 1
        %s563 = scalar_select %p562, %s33, 1
        %s564 = scalar_lea.vmem %s5, %s563
        %p565 = scmp.lt.s32.totalorder %s33, 1
        %s566 = scalar_select %p565, %s33, 1
        %s567 = smul.addr %s566, 4
        %s568 = smul.addr %s567, 4
        %s569 = scalar_lea.vmem %s6, %s568
        %p570 = scmp.lt.s32.totalorder %s33, 1
        %s571 = scalar_select %p570, %s33, 1
        %s572 = scalar_lea.vmem %s7, %s571
        %p573 = scmp.lt.s32.totalorder %s33, 1
        %s574 = scalar_select %p573, %s33, 1
        %s575 = smul.addr %s574, 4
        %s576 = smul.addr %s575, 4
        %s577 = scalar_lea.vmem %s8, %s576
        %p578 = scmp.lt.s32.totalorder %s33, 1
        %s579 = scalar_select %p578, %s33, 1
        %s580 = smul.addr %s579, 8
        %s581 = smul.addr %s580, 4
        %s582 = scalar_lea.vmem %s9, %s581
        %p583 = scmp.lt.s32.totalorder %s33, 1
        %s584 = scalar_select %p583, %s33, 1
        %p585 = scmp.lt.s32.totalorder %s32, 1
        %s586 = scalar_select %p585, %s32, 1
        %s587 = smul.addr %s584, 2
        %s588 = sadd.s32 %s586, %s587
        %s589 = smul.addr %s588, 4
        %s590 = scalar_lea.vmem %s13, %s589
        %p592 = scmp.eq.s32.totalorder %s33, 0
        // Predicated region
        $region69: #{qwen2_forward.1} parent=67 // pred_check
          %p593 = pneg %p592
        $region70: #{qwen2_forward.1} parent=67 // pred_check_branch
          %595 = sbr.rel (%p593) target = $region72
        $region71: #{qwen2_forward.1} parent=67 // pred_region
          %v596 = vld [vmem:[%s553] sm:$0xf]
          %v597 = vunpack.c.l.bf16 %v596
          %vm598 = vcmask 261120
          %599 = vst.msk [vmem:[#allocation2] sm:$0xff] %vm598, %v597
        $region72: #{qwen2_forward.1} parent=67 // pred_fallthru
          _
        %v600 = vld [vmem:[#allocation2] sm:$0xff]
        %v601 = vld [vmem:[%s556] sm:$0x1]
        %v602 = vunpack.c.l.bf16 %v601
        %v603 = vmul.f32 %v600, %v600
        %vm604 = vcmask 261120
        %v605 = vsel %vm604, %v603, 0.0
        %606 = vadd.xlane.f32.xlu0 %v605
        %v607 = vpop.xlane.xlu0 %606
        %v608 = vrcp.pop 32.0
        %v609 = vmul.f32 %v607, %v608
        %v610 = vadd.f32 %v609, 1e-06
        %v611 = vrsqrt.pop %v610
        %v612 = vmul.f32 %v600, %v611
        %v613 = vlaneseq
        %v614 = vshrl.u32 %v613, 7
        %v615 = vsub.s32 0, %v614
        %v616 = vrot.slane %v602, %v615
        %v617 = vmul.f32 %v612, %v616
        %v618 = vpack.c.bf16 %v617, %v617
        %v619 = vld [vmem:[%s561] sm:$0xf]
        %v620 = vld [vmem:[%s561 + $0x4] sm:$0xf]
        %v621 = vld [vmem:[%s561 + $0x8] sm:$0xf]
        %v622 = vld [vmem:[%s561 + $0xc] sm:$0xf]
        %v623 = vld [vmem:[%s564] sm:$0x1]
        %v624 = vunpack.c.l.bf16 %v623
        %v625 = vlaneseq
        %v626 = vshrl.u32 %v625, 7
        %v627 = vsub.s32 0, %v626
        %v628 = vrot.slane %v624, %v627
        %v633 = vunpack.c.l.b16 %v619
        %v634 = vunpack.c.l.b16 %v620
        %v635 = vunpack.c.l.b16 %v621
        %v636 = vunpack.c.l.b16 %v622
        %v637 = vpack.c.b16 %v634, %v633
        %v638 = vpack.c.b16 %v636, %v635
        %v642 = vsel %vm604, %v618, 0
        %644 = vmatprep.subr.bf16.mxu0 0
        %645 = vmatpush1.bf16.msra.mxu0 %v637
        %646 = vmatprep.subr.bf16.mxu0 0
        %647 = vmatpush1.bf16.msra.mxu0 %v638
        %648 = vmatprep.subr.bf16.mxu0 0
        %649 = vmatpush1.bf16.msra.mxu0 0
        %650 = vmatprep.subr.bf16.mxu0 0
        %651 = vmatpush1.bf16.msra.mxu0 0
        %652 = vmatprep.subr.bf16.mxu0 0
        %653 = vmatpush1.bf16.msra.mxu0 0
        %654 = vmatprep.subr.bf16.mxu0 0
        %655 = vmatpush1.bf16.msra.mxu0 0
        %656 = vmatprep.subr.bf16.mxu0 0
        %657 = vmatpush1.bf16.msra.mxu0 0
        %658 = vmatprep.subr.bf16.mxu0 0
        %659 = vmatpush1.bf16.msra.mxu0 0
        %660 = vmatprep.subr.bf16.mxu0 0
        %661 = vmatpush1.bf16.msra.mxu0 0
        %662 = vmatprep.subr.bf16.mxu0 0
        %663 = vmatpush1.bf16.msra.mxu0 0
        %664 = vmatprep.subr.bf16.mxu0 0
        %665 = vmatpush1.bf16.msra.mxu0 0
        %666 = vmatprep.subr.bf16.mxu0 0
        %667 = vmatpush1.bf16.msra.mxu0 0
        %668 = vmatprep.subr.bf16.mxu0 0
        %669 = vmatpush1.bf16.msra.mxu0 0
        %670 = vmatprep.subr.bf16.mxu0 0
        %671 = vmatpush1.bf16.msra.mxu0 0
        %672 = vmatprep.subr.bf16.mxu0 0
        %673 = vmatpush1.bf16.msra.mxu0 0
        %674 = vmatprep.subr.bf16.mxu0 0
        %675 = vmatpush1.bf16.msra.mxu0 0
        %676 = vmatprep.mubr.bf16.mxu0 0
        %677 = vmatmul.mubr.bf16.gmra.mrb[0].mxu0 %v642
        %v678 = vpop.f32.mrb[0].mxu0
        %v679 = vadd.f32 %v628, %v678
        %v680 = vpop.f32.mrb[0].mxu0
        %v681 = vpop.f32.mrb[0].mxu0
        %v682 = vpop.f32.mrb[0].mxu0
        %683 = vdwg.mxu0
        %685 = vrot.lane.b32.xlu0 %v679, 120
        %v686 = vpop.permute.xlu0 %685
        %688 = vrot.lane.b32.xlu0 %v679, 112
        %v689 = vpop.permute.xlu0 %688
        %691 = vrot.lane.b32.xlu0 %v679, 104
        %v692 = vpop.permute.xlu0 %691
        %v694 = vld [vmem:[%s1] sm:$0xff]
        %v695 = vld [vmem:[%s2] sm:$0xff]
        %v696 = vsub.f32 0.0, %v679
        %v697 = vsub.f32 0.0, %v686
        %v698 = vsub.f32 0.0, %v689
        %v699 = vsub.f32 0.0, %v692
        %704 = vrot.lane.b32.xlu0 %v696, 124
        %v705 = vpop.permute.xlu0 %704
        %706 = vrot.lane.b32.xlu0 %v697, 124
        %v707 = vpop.permute.xlu0 %706
        %708 = vrot.lane.b32.xlu0 %v698, 124
        %v709 = vpop.permute.xlu0 %708
        %710 = vrot.lane.b32.xlu0 %v699, 124
        %v711 = vpop.permute.xlu0 %710
        %716 = vrot.lane.b32.xlu0 %v679, 4
        %v717 = vpop.permute.xlu0 %716
        %718 = vrot.lane.b32.xlu0 %v686, 4
        %v719 = vpop.permute.xlu0 %718
        %720 = vrot.lane.b32.xlu0 %v689, 4
        %v721 = vpop.permute.xlu0 %720
        %722 = vrot.lane.b32.xlu0 %v692, 4
        %v723 = vpop.permute.xlu0 %722
        %vm728 = vcmask 31744
        %v729 = vsel %vm728, %v705, %v717
        %v730 = vsel %vm728, %v707, %v719
        %v731 = vsel %vm728, %v709, %v721
        %v732 = vsel %vm728, %v711, %v723
        %v733 = vmul.f32 %v679, %v694
        %v734 = vmul.f32 %v686, %v694
        %v735 = vmul.f32 %v689, %v694
        %v736 = vmul.f32 %v692, %v694
        %v737 = vmul.f32 %v729, %v695
        %v738 = vmul.f32 %v730, %v695
        %v739 = vmul.f32 %v731, %v695
        %v740 = vmul.f32 %v732, %v695
        %v741 = vadd.f32 %v733, %v737
        %v742 = vadd.f32 %v734, %v738
        %v743 = vadd.f32 %v735, %v739
        %v744 = vadd.f32 %v736, %v740
        %745 = vrot.lane.b32.xlu0 %v696, 92
        %v746 = vpop.permute.xlu0 %745
        %747 = vrot.lane.b32.xlu0 %v697, 92
        %v748 = vpop.permute.xlu0 %747
        %751 = vrot.lane.b32.xlu0 %v679, 100
        %v752 = vpop.permute.xlu0 %751
        %753 = vrot.lane.b32.xlu0 %v686, 100
        %v754 = vpop.permute.xlu0 %753
        %v757 = vsel %vm728, %v746, %v752
        %v758 = vsel %vm728, %v748, %v754
        %760 = vrot.lane.b32.xlu0 %v694, 32
        %v761 = vpop.permute.xlu0 %760
        %v763 = vmul.f32 %v679, %v761
        %v764 = vmul.f32 %v686, %v761
        %v765 = vmul.f32 %v757, %v695
        %v766 = vmul.f32 %v758, %v695
        %769 = vrot.lane.b32.xlu0 %v765, 32
        %v770 = vpop.permute.xlu0 %769
        %771 = vrot.lane.b32.xlu0 %v766, 32
        %v772 = vpop.permute.xlu0 %771
        %v775 = vadd.f32 %v763, %v770
        %v776 = vadd.f32 %v764, %v772
        %778 = vrot.lane.b32.xlu0 %v775, 96
        %v779 = vpop.permute.xlu0 %778
        %782 = vrot.lane.b32.xlu0 %v776, 104
        %v783 = vpop.permute.xlu0 %782
        %785 = vrot.lane.b32.xlu0 %v679, 96
        %v786 = vpop.permute.xlu0 %785
        %788 = vrot.lane.b32.xlu0 %v686, 104
        %v789 = vpop.permute.xlu0 %788
        %vm791 = vcmask 64512
        %v792 = vsel %vm791, %v779, %v783
        %vm793 = vcmask 130048
        %v794 = vsel %vm793, %v792, %v786
        %vm795 = vcmask 195584
        %v796 = vsel %vm795, %v794, %v789
        %v797 = vpack.c.bf16 %v796, %v796
        %vm798 = vcmask 257024
        %799 = vst.msk [vmem:[%s590] sm:$0xf] %vm798, %v797
        %v800 = vpack.c.bf16 %v775, %v775
        %v801 = vpack.c.bf16 %v776, %v776
        %v802 = vpack.c.bf16 %v679, %v679
        %v803 = vpack.c.bf16 %v686, %v686
        %v804 = vpack.c.bf16 %v741, %v741
        %v805 = vpack.c.bf16 %v742, %v742
        %v806 = vpack.c.bf16 %v743, %v743
        %v807 = vpack.c.bf16 %v744, %v744
        %809 = vrot.lane.b32.xlu0 %v800, 96
        %v810 = vpop.permute.xlu0 %809
        %v812 = vsel %vm791, %v804, 0
        %v815 = vsel %vm791, %v810, 0
        %817 = vmatprep.subr.bf16.mxu0 0
        %818 = vmatpush1.bf16.xpose.msra.mxu0 %v815
        %819 = vmatprep.subr.bf16.mxu0 0
        %820 = vmatpush1.bf16.xpose.msra.mxu0 0
        %821 = vmatprep.subr.bf16.mxu0 0
        %822 = vmatpush1.bf16.xpose.msra.mxu0 0
        %823 = vmatprep.subr.bf16.mxu0 0
        %824 = vmatpush1.bf16.xpose.msra.mxu0 0
        %825 = vmatprep.subr.bf16.mxu0 0
        %826 = vmatpush1.bf16.xpose.msra.mxu0 0
        %827 = vmatprep.subr.bf16.mxu0 0
        %828 = vmatpush1.bf16.xpose.msra.mxu0 0
        %829 = vmatprep.subr.bf16.mxu0 0
        %830 = vmatpush1.bf16.xpose.msra.mxu0 0
        %831 = vmatprep.subr.bf16.mxu0 0
        %832 = vmatpush1.bf16.xpose.msra.mxu0 0
        %833 = vmatprep.subr.bf16.mxu0 0
        %834 = vmatpush1.bf16.xpose.msra.mxu0 0
        %835 = vmatprep.subr.bf16.mxu0 0
        %836 = vmatpush1.bf16.xpose.msra.mxu0 0
        %837 = vmatprep.subr.bf16.mxu0 0
        %838 = vmatpush1.bf16.xpose.msra.mxu0 0
        %839 = vmatprep.subr.bf16.mxu0 0
        %840 = vmatpush1.bf16.xpose.msra.mxu0 0
        %841 = vmatprep.subr.bf16.mxu0 0
        %842 = vmatpush1.bf16.xpose.msra.mxu0 0
        %843 = vmatprep.subr.bf16.mxu0 0
        %844 = vmatpush1.bf16.xpose.msra.mxu0 0
        %845 = vmatprep.subr.bf16.mxu0 0
        %846 = vmatpush1.bf16.xpose.msra.mxu0 0
        %847 = vmatprep.subr.bf16.mxu0 0
        %848 = vmatpush1.bf16.xpose.msra.mxu0 0
        %849 = vmatprep.mubr.bf16.mxu0 0
        %850 = vmatmul.mubr.bf16.gmra.mrb[0].mxu0 %v812
        %v851 = vpop.f32.mrb[0].mxu0
        %v852 = vadd.f32 0.0, %v851
        %v853 = vpop.f32.mrb[0].mxu0
        %v854 = vpop.f32.mrb[0].mxu0
        %v855 = vpop.f32.mrb[0].mxu0
        %856 = vdwg.mxu0
        %v858 = vsel %vm791, %v805, 0
        %860 = vmatprep.subr.bf16.mxu0 0
        %861 = vmatpush1.bf16.xpose.msra.mxu0 %v815
        %862 = vmatprep.subr.bf16.mxu0 0
        %863 = vmatpush1.bf16.xpose.msra.mxu0 0
        %864 = vmatprep.subr.bf16.mxu0 0
        %865 = vmatpush1.bf16.xpose.msra.mxu0 0
        %866 = vmatprep.subr.bf16.mxu0 0
        %867 = vmatpush1.bf16.xpose.msra.mxu0 0
        %868 = vmatprep.subr.bf16.mxu0 0
        %869 = vmatpush1.bf16.xpose.msra.mxu0 0
        %870 = vmatprep.subr.bf16.mxu0 0
        %871 = vmatpush1.bf16.xpose.msra.mxu0 0
        %872 = vmatprep.subr.bf16.mxu0 0
        %873 = vmatpush1.bf16.xpose.msra.mxu0 0
        %874 = vmatprep.subr.bf16.mxu0 0
        %875 = vmatpush1.bf16.xpose.msra.mxu0 0
        %876 = vmatprep.subr.bf16.mxu0 0
        %877 = vmatpush1.bf16.xpose.msra.mxu0 0
        %878 = vmatprep.subr.bf16.mxu0 0
        %879 = vmatpush1.bf16.xpose.msra.mxu0 0
        %880 = vmatprep.subr.bf16.mxu0 0
        %881 = vmatpush1.bf16.xpose.msra.mxu0 0
        %882 = vmatprep.subr.bf16.mxu0 0
        %883 = vmatpush1.bf16.xpose.msra.mxu0 0
        %884 = vmatprep.subr.bf16.mxu0 0
        %885 = vmatpush1.bf16.xpose.msra.mxu0 0
        %886 = vmatprep.subr.bf16.mxu0 0
        %887 = vmatpush1.bf16.xpose.msra.mxu0 0
        %888 = vmatprep.subr.bf16.mxu0 0
        %889 = vmatpush1.bf16.xpose.msra.mxu0 0
        %890 = vmatprep.subr.bf16.mxu0 0
        %891 = vmatpush1.bf16.xpose.msra.mxu0 0
        %892 = vmatprep.mubr.bf16.mxu0 0
        %893 = vmatmul.mubr.bf16.gmra.mrb[0].mxu0 %v858
        %v894 = vpop.f32.mrb[0].mxu0
        %v895 = vadd.f32 0.0, %v894
        %v896 = vpop.f32.mrb[0].mxu0
        %v897 = vpop.f32.mrb[0].mxu0
        %v898 = vpop.f32.mrb[0].mxu0
        %899 = vdwg.mxu0
        %901 = vrot.lane.b32.xlu0 %v801, 96
        %v902 = vpop.permute.xlu0 %901
        %v904 = vsel %vm791, %v806, 0
        %v907 = vsel %vm791, %v902, 0
        %909 = vmatprep.subr.bf16.mxu0 0
        %910 = vmatpush1.bf16.xpose.msra.mxu0 %v907
        %911 = vmatprep.subr.bf16.mxu0 0
        %912 = vmatpush1.bf16.xpose.msra.mxu0 0
        %913 = vmatprep.subr.bf16.mxu0 0
        %914 = vmatpush1.bf16.xpose.msra.mxu0 0
        %915 = vmatprep.subr.bf16.mxu0 0
        %916 = vmatpush1.bf16.xpose.msra.mxu0 0
        %917 = vmatprep.subr.bf16.mxu0 0
        %918 = vmatpush1.bf16.xpose.msra.mxu0 0
        %919 = vmatprep.subr.bf16.mxu0 0
        %920 = vmatpush1.bf16.xpose.msra.mxu0 0
        %921 = vmatprep.subr.bf16.mxu0 0
        %922 = vmatpush1.bf16.xpose.msra.mxu0 0
        %923 = vmatprep.subr.bf16.mxu0 0
        %924 = vmatpush1.bf16.xpose.msra.mxu0 0
        %925 = vmatprep.subr.bf16.mxu0 0
        %926 = vmatpush1.bf16.xpose.msra.mxu0 0
        %927 = vmatprep.subr.bf16.mxu0 0
        %928 = vmatpush1.bf16.xpose.msra.mxu0 0
        %929 = vmatprep.subr.bf16.mxu0 0
        %930 = vmatpush1.bf16.xpose.msra.mxu0 0
        %931 = vmatprep.subr.bf16.mxu0 0
        %932 = vmatpush1.bf16.xpose.msra.mxu0 0
        %933 = vmatprep.subr.bf16.mxu0 0
        %934 = vmatpush1.bf16.xpose.msra.mxu0 0
        %935 = vmatprep.subr.bf16.mxu0 0
        %936 = vmatpush1.bf16.xpose.msra.mxu0 0
        %937 = vmatprep.subr.bf16.mxu0 0
        %938 = vmatpush1.bf16.xpose.msra.mxu0 0
        %939 = vmatprep.subr.bf16.mxu0 0
        %940 = vmatpush1.bf16.xpose.msra.mxu0 0
        %941 = vmatprep.mubr.bf16.mxu0 0
        %942 = vmatmul.mubr.bf16.gmra.mrb[0].mxu0 %v904
        %v943 = vpop.f32.mrb[0].mxu0
        %v944 = vadd.f32 0.0, %v943
        %v945 = vpop.f32.mrb[0].mxu0
        %v946 = vpop.f32.mrb[0].mxu0
        %v947 = vpop.f32.mrb[0].mxu0
        %948 = vdwg.mxu0
        %v950 = vsel %vm791, %v807, 0
        %952 = vmatprep.subr.bf16.mxu0 0
        %953 = vmatpush1.bf16.xpose.msra.mxu0 %v907
        %954 = vmatprep.subr.bf16.mxu0 0
        %955 = vmatpush1.bf16.xpose.msra.mxu0 0
        %956 = vmatprep.subr.bf16.mxu0 0
        %957 = vmatpush1.bf16.xpose.msra.mxu0 0
        %958 = vmatprep.subr.bf16.mxu0 0
        %959 = vmatpush1.bf16.xpose.msra.mxu0 0
        %960 = vmatprep.subr.bf16.mxu0 0
        %961 = vmatpush1.bf16.xpose.msra.mxu0 0
        %962 = vmatprep.subr.bf16.mxu0 0
        %963 = vmatpush1.bf16.xpose.msra.mxu0 0
        %964 = vmatprep.subr.bf16.mxu0 0
        %965 = vmatpush1.bf16.xpose.msra.mxu0 0
        %966 = vmatprep.subr.bf16.mxu0 0
        %967 = vmatpush1.bf16.xpose.msra.mxu0 0
        %968 = vmatprep.subr.bf16.mxu0 0
        %969 = vmatpush1.bf16.xpose.msra.mxu0 0
        %970 = vmatprep.subr.bf16.mxu0 0
        %971 = vmatpush1.bf16.xpose.msra.mxu0 0
        %972 = vmatprep.subr.bf16.mxu0 0
        %973 = vmatpush1.bf16.xpose.msra.mxu0 0
        %974 = vmatprep.subr.bf16.mxu0 0
        %975 = vmatpush1.bf16.xpose.msra.mxu0 0
        %976 = vmatprep.subr.bf16.mxu0 0
        %977 = vmatpush1.bf16.xpose.msra.mxu0 0
        %978 = vmatprep.subr.bf16.mxu0 0
        %979 = vmatpush1.bf16.xpose.msra.mxu0 0
        %980 = vmatprep.subr.bf16.mxu0 0
        %981 = vmatpush1.bf16.xpose.msra.mxu0 0
        %982 = vmatprep.subr.bf16.mxu0 0
        %983 = vmatpush1.bf16.xpose.msra.mxu0 0
        %984 = vmatprep.mubr.bf16.mxu0 0
        %985 = vmatmul.mubr.bf16.gmra.mrb[0].mxu0 %v950
        %v986 = vpop.f32.mrb[0].mxu0
        %v987 = vadd.f32 0.0, %v986
        %v988 = vpop.f32.mrb[0].mxu0
        %v989 = vpop.f32.mrb[0].mxu0
        %v990 = vpop.f32.mrb[0].mxu0
        %991 = vdwg.mxu0
        %v992 = vmul.f32 %v852, 0.5100697
        %v993 = vmul.f32 %v895, 0.5100697
        %v994 = vmul.f32 %v944, 0.5100697
        %v995 = vmul.f32 %v987, 0.5100697
        %v996 = vlaneseq
        %v997 = vshrl.u32 %v996, 7
        %v998 = vlaneseq
        %v999 = vand.u32 %v998, 127
        %vm1000 = vcmp.le.s32.totalorder %v999, %v997
        %v1001 = vsel %vm1000, 1, 0
        %vm1002 = vcmp.eq.s32.totalorder %v1001, 1
        %v1003 = vsel %vm1002, %v992, -1e+30
        %v1004 = vsel %vm1002, %v993, -1e+30
        %v1005 = vsel %vm1002, %v994, -1e+30
        %v1006 = vsel %vm1002, %v995, -1e+30
        %v1007 = vsel %vm791, %v1003, -inf
        %1008 = vmax.xlane.f32.xlu0 %v1007
        %v1009 = vpop.xlane.xlu0 %1008
        %v1010 = vsel %vm791, %v1004, -inf
        %1011 = vmax.xlane.f32.xlu0 %v1010
        %v1012 = vpop.xlane.xlu0 %1011
        %v1013 = vsel %vm791, %v1005, -inf
        %1014 = vmax.xlane.f32.xlu0 %v1013
        %v1015 = vpop.xlane.xlu0 %1014
        %v1016 = vsel %vm791, %v1006, -inf
        %1017 = vmax.xlane.f32.xlu0 %v1016
        %v1018 = vpop.xlane.xlu0 %1017
        %v1019 = vsub.f32 %v1003, %v1009
        %v1020 = vsub.f32 %v1004, %v1012
        %v1021 = vsub.f32 %v1005, %v1015
        %v1022 = vsub.f32 %v1006, %v1018
        %v1023 = vpow.pop %v1019
        %v1024 = vpow.pop %v1020
        %v1025 = vpow.pop %v1021
        %v1026 = vpow.pop %v1022
        %v1027 = vsel %vm791, %v1023, 0.0
        %1028 = vadd.xlane.f32.xlu0 %v1027
        %v1029 = vpop.xlane.xlu0 %1028
        %v1030 = vsel %vm791, %v1024, 0.0
        %1031 = vadd.xlane.f32.xlu0 %v1030
        %v1032 = vpop.xlane.xlu0 %1031
        %v1033 = vsel %vm791, %v1025, 0.0
        %1034 = vadd.xlane.f32.xlu0 %v1033
        %v1035 = vpop.xlane.xlu0 %1034
        %v1036 = vsel %vm791, %v1026, 0.0
        %1037 = vadd.xlane.f32.xlu0 %v1036
        %v1038 = vpop.xlane.xlu0 %1037
        %v1039 = vrcp.pop %v1029
        %v1040 = vrcp.pop %v1032
        %v1041 = vrcp.pop %v1035
        %v1042 = vrcp.pop %v1038
        %v1043 = vpack.c.bf16 %v1023, %v1023
        %v1044 = vpack.c.bf16 %v1024, %v1024
        %v1045 = vpack.c.bf16 %v1025, %v1025
        %v1046 = vpack.c.bf16 %v1026, %v1026
        %1048 = vrot.lane.b32.xlu0 %v802, 80
        %v1049 = vpop.permute.xlu0 %1048
        %v1051 = vsel %vm791, %v1043, 0
        %vm1053 = vcmask 1043456
        %v1055 = vsel %vm1053, %v1049, 0
        %1057 = vmatprep.subr.bf16.mxu0 0
        %1058 = vmatpush1.bf16.msra.mxu0 %v1055
        %1059 = vmatprep.subr.bf16.mxu0 0
        %1060 = vmatpush1.bf16.msra.mxu0 0
        %1061 = vmatprep.subr.bf16.mxu0 0
        %1062 = vmatpush1.bf16.msra.mxu0 0
        %1063 = vmatprep.subr.bf16.mxu0 0
        %1064 = vmatpush1.bf16.msra.mxu0 0
        %1065 = vmatprep.subr.bf16.mxu0 0
        %1066 = vmatpush1.bf16.msra.mxu0 0
        %1067 = vmatprep.subr.bf16.mxu0 0
        %1068 = vmatpush1.bf16.msra.mxu0 0
        %1069 = vmatprep.subr.bf16.mxu0 0
        %1070 = vmatpush1.bf16.msra.mxu0 0
        %1071 = vmatprep.subr.bf16.mxu0 0
        %1072 = vmatpush1.bf16.msra.mxu0 0
        %1073 = vmatprep.subr.bf16.mxu0 0
        %1074 = vmatpush1.bf16.msra.mxu0 0
        %1075 = vmatprep.subr.bf16.mxu0 0
        %1076 = vmatpush1.bf16.msra.mxu0 0
        %1077 = vmatprep.subr.bf16.mxu0 0
        %1078 = vmatpush1.bf16.msra.mxu0 0
        %1079 = vmatprep.subr.bf16.mxu0 0
        %1080 = vmatpush1.bf16.msra.mxu0 0
        %1081 = vmatprep.subr.bf16.mxu0 0
        %1082 = vmatpush1.bf16.msra.mxu0 0
        %1083 = vmatprep.subr.bf16.mxu0 0
        %1084 = vmatpush1.bf16.msra.mxu0 0
        %1085 = vmatprep.subr.bf16.mxu0 0
        %1086 = vmatpush1.bf16.msra.mxu0 0
        %1087 = vmatprep.subr.bf16.mxu0 0
        %1088 = vmatpush1.bf16.msra.mxu0 0
        %1089 = vmatprep.mubr.bf16.mxu0 0
        %1090 = vmatmul.mubr.bf16.gmra.mrb[0].mxu0 %v1051
        %v1091 = vpop.f32.mrb[0].mxu0
        %v1092 = vadd.f32 0.0, %v1091
        %v1093 = vpop.f32.mrb[0].mxu0
        %v1094 = vpop.f32.mrb[0].mxu0
        %v1095 = vpop.f32.mrb[0].mxu0
        %1096 = vdwg.mxu0
        %v1098 = vsel %vm791, %v1044, 0
        %1100 = vmatprep.subr.bf16.mxu0 0
        %1101 = vmatpush1.bf16.msra.mxu0 %v1055
        %1102 = vmatprep.subr.bf16.mxu0 0
        %1103 = vmatpush1.bf16.msra.mxu0 0
        %1104 = vmatprep.subr.bf16.mxu0 0
        %1105 = vmatpush1.bf16.msra.mxu0 0
        %1106 = vmatprep.subr.bf16.mxu0 0
        %1107 = vmatpush1.bf16.msra.mxu0 0
        %1108 = vmatprep.subr.bf16.mxu0 0
        %1109 = vmatpush1.bf16.msra.mxu0 0
        %1110 = vmatprep.subr.bf16.mxu0 0
        %1111 = vmatpush1.bf16.msra.mxu0 0
        %1112 = vmatprep.subr.bf16.mxu0 0
        %1113 = vmatpush1.bf16.msra.mxu0 0
        %1114 = vmatprep.subr.bf16.mxu0 0
        %1115 = vmatpush1.bf16.msra.mxu0 0
        %1116 = vmatprep.subr.bf16.mxu0 0
        %1117 = vmatpush1.bf16.msra.mxu0 0
        %1118 = vmatprep.subr.bf16.mxu0 0
        %1119 = vmatpush1.bf16.msra.mxu0 0
        %1120 = vmatprep.subr.bf16.mxu0 0
        %1121 = vmatpush1.bf16.msra.mxu0 0
        %1122 = vmatprep.subr.bf16.mxu0 0
        %1123 = vmatpush1.bf16.msra.mxu0 0
        %1124 = vmatprep.subr.bf16.mxu0 0
        %1125 = vmatpush1.bf16.msra.mxu0 0
        %1126 = vmatprep.subr.bf16.mxu0 0
        %1127 = vmatpush1.bf16.msra.mxu0 0
        %1128 = vmatprep.subr.bf16.mxu0 0
        %1129 = vmatpush1.bf16.msra.mxu0 0
        %1130 = vmatprep.subr.bf16.mxu0 0
        %1131 = vmatpush1.bf16.msra.mxu0 0
        %1132 = vmatprep.mubr.bf16.mxu0 0
        %1133 = vmatmul.mubr.bf16.gmra.mrb[0].mxu0 %v1098
        %v1134 = vpop.f32.mrb[0].mxu0
        %v1135 = vadd.f32 0.0, %v1134
        %v1136 = vpop.f32.mrb[0].mxu0
        %v1137 = vpop.f32.mrb[0].mxu0
        %v1138 = vpop.f32.mrb[0].mxu0
        %1139 = vdwg.mxu0
        %1141 = vrot.lane.b32.xlu0 %v803, 80
        %v1142 = vpop.permute.xlu0 %1141
        %v1144 = vsel %vm791, %v1045, 0
        %v1147 = vsel %vm1053, %v1142, 0
        %1149 = vmatprep.subr.bf16.mxu0 0
        %1150 = vmatpush1.bf16.msra.mxu0 %v1147
        %1151 = vmatprep.subr.bf16.mxu0 0
        %1152 = vmatpush1.bf16.msra.mxu0 0
        %1153 = vmatprep.subr.bf16.mxu0 0
        %1154 = vmatpush1.bf16.msra.mxu0 0
        %1155 = vmatprep.subr.bf16.mxu0 0
        %1156 = vmatpush1.bf16.msra.mxu0 0
        %1157 = vmatprep.subr.bf16.mxu0 0
        %1158 = vmatpush1.bf16.msra.mxu0 0
        %1159 = vmatprep.subr.bf16.mxu0 0
        %1160 = vmatpush1.bf16.msra.mxu0 0
        %1161 = vmatprep.subr.bf16.mxu0 0
        %1162 = vmatpush1.bf16.msra.mxu0 0
        %1163 = vmatprep.subr.bf16.mxu0 0
        %1164 = vmatpush1.bf16.msra.mxu0 0
        %1165 = vmatprep.subr.bf16.mxu0 0
        %1166 = vmatpush1.bf16.msra.mxu0 0
        %1167 = vmatprep.subr.bf16.mxu0 0
        %1168 = vmatpush1.bf16.msra.mxu0 0
        %1169 = vmatprep.subr.bf16.mxu0 0
        %1170 = vmatpush1.bf16.msra.mxu0 0
        %1171 = vmatprep.subr.bf16.mxu0 0
        %1172 = vmatpush1.bf16.msra.mxu0 0
        %1173 = vmatprep.subr.bf16.mxu0 0
        %1174 = vmatpush1.bf16.msra.mxu0 0
        %1175 = vmatprep.subr.bf16.mxu0 0
        %1176 = vmatpush1.bf16.msra.mxu0 0
        %1177 = vmatprep.subr.bf16.mxu0 0
        %1178 = vmatpush1.bf16.msra.mxu0 0
        %1179 = vmatprep.subr.bf16.mxu0 0
        %1180 = vmatpush1.bf16.msra.mxu0 0
        %1181 = vmatprep.mubr.bf16.mxu0 0
        %1182 = vmatmul.mubr.bf16.gmra.mrb[0].mxu0 %v1144
        %v1183 = vpop.f32.mrb[0].mxu0
        %v1184 = vadd.f32 0.0, %v1183
        %v1185 = vpop.f32.mrb[0].mxu0
        %v1186 = vpop.f32.mrb[0].mxu0
        %v1187 = vpop.f32.mrb[0].mxu0
        %1188 = vdwg.mxu0
        %v1190 = vsel %vm791, %v1046, 0
        %1192 = vmatprep.subr.bf16.mxu0 0
        %1193 = vmatpush1.bf16.msra.mxu0 %v1147
        %1194 = vmatprep.subr.bf16.mxu0 0
        %1195 = vmatpush1.bf16.msra.mxu0 0
        %1196 = vmatprep.subr.bf16.mxu0 0
        %1197 = vmatpush1.bf16.msra.mxu0 0
        %1198 = vmatprep.subr.bf16.mxu0 0
        %1199 = vmatpush1.bf16.msra.mxu0 0
        %1200 = vmatprep.subr.bf16.mxu0 0
        %1201 = vmatpush1.bf16.msra.mxu0 0
        %1202 = vmatprep.subr.bf16.mxu0 0
        %1203 = vmatpush1.bf16.msra.mxu0 0
        %1204 = vmatprep.subr.bf16.mxu0 0
        %1205 = vmatpush1.bf16.msra.mxu0 0
        %1206 = vmatprep.subr.bf16.mxu0 0
        %1207 = vmatpush1.bf16.msra.mxu0 0
        %1208 = vmatprep.subr.bf16.mxu0 0
        %1209 = vmatpush1.bf16.msra.mxu0 0
        %1210 = vmatprep.subr.bf16.mxu0 0
        %1211 = vmatpush1.bf16.msra.mxu0 0
        %1212 = vmatprep.subr.bf16.mxu0 0
        %1213 = vmatpush1.bf16.msra.mxu0 0
        %1214 = vmatprep.subr.bf16.mxu0 0
        %1215 = vmatpush1.bf16.msra.mxu0 0
        %1216 = vmatprep.subr.bf16.mxu0 0
        %1217 = vmatpush1.bf16.msra.mxu0 0
        %1218 = vmatprep.subr.bf16.mxu0 0
        %1219 = vmatpush1.bf16.msra.mxu0 0
        %1220 = vmatprep.subr.bf16.mxu0 0
        %1221 = vmatpush1.bf16.msra.mxu0 0
        %1222 = vmatprep.subr.bf16.mxu0 0
        %1223 = vmatpush1.bf16.msra.mxu0 0
        %1224 = vmatprep.mubr.bf16.mxu0 0
        %1225 = vmatmul.mubr.bf16.gmra.mrb[0].mxu0 %v1190
        %v1226 = vpop.f32.mrb[0].mxu0
        %v1227 = vadd.f32 0.0, %v1226
        %v1228 = vpop.f32.mrb[0].mxu0
        %v1229 = vpop.f32.mrb[0].mxu0
        %v1230 = vpop.f32.mrb[0].mxu0
        %1231 = vdwg.mxu0
        %v1232 = vmul.f32 %v1092, %v1039
        %v1233 = vmul.f32 %v1135, %v1040
        %v1234 = vmul.f32 %v1184, %v1041
        %v1235 = vmul.f32 %v1227, %v1042
        %1237 = vrot.lane.b32.xlu0 %v1233, 8
        %v1238 = vpop.permute.xlu0 %1237
        %1241 = vrot.lane.b32.xlu0 %v1234, 16
        %v1242 = vpop.permute.xlu0 %1241
        %1245 = vrot.lane.b32.xlu0 %v1235, 24
        %v1246 = vpop.permute.xlu0 %1245
        %v1248 = vsel %vm791, %v1232, %v1238
        %v1249 = vsel %vm793, %v1248, %v1242
        %v1250 = vsel %vm795, %v1249, %v1246
        %v1251 = vpack.c.bf16 %v1250, %v1250
        %v1252 = vld [vmem:[%s569] sm:$0xf]
        %v1253 = vld [vmem:[%s569 + $0x4] sm:$0xf]
        %v1254 = vld [vmem:[%s569 + $0x8] sm:$0xf]
        %v1255 = vld [vmem:[%s569 + $0xc] sm:$0xf]
        %v1260 = vunpack.c.l.b16 %v1252
        %v1261 = vunpack.c.l.b16 %v1253
        %v1262 = vunpack.c.l.b16 %v1254
        %v1263 = vunpack.c.l.b16 %v1255
        %v1264 = vpack.c.b16 %v1261, %v1260
        %v1265 = vpack.c.b16 %v1263, %v1262
        %v1269 = vsel %vm604, %v1251, 0
        %1271 = vmatprep.subr.bf16.mxu0 0
        %1272 = vmatpush1.bf16.msra.mxu0 %v1264
        %1273 = vmatprep.subr.bf16.mxu0 0
        %1274 = vmatpush1.bf16.msra.mxu0 %v1265
        %1275 = vmatprep.subr.bf16.mxu0 0
        %1276 = vmatpush1.bf16.msra.mxu0 0
        %1277 = vmatprep.subr.bf16.mxu0 0
        %1278 = vmatpush1.bf16.msra.mxu0 0
        %1279 = vmatprep.subr.bf16.mxu0 0
        %1280 = vmatpush1.bf16.msra.mxu0 0
        %1281 = vmatprep.subr.bf16.mxu0 0
        %1282 = vmatpush1.bf16.msra.mxu0 0
        %1283 = vmatprep.subr.bf16.mxu0 0
        %1284 = vmatpush1.bf16.msra.mxu0 0
        %1285 = vmatprep.subr.bf16.mxu0 0
        %1286 = vmatpush1.bf16.msra.mxu0 0
        %1287 = vmatprep.subr.bf16.mxu0 0
        %1288 = vmatpush1.bf16.msra.mxu0 0
        %1289 = vmatprep.subr.bf16.mxu0 0
        %1290 = vmatpush1.bf16.msra.mxu0 0
        %1291 = vmatprep.subr.bf16.mxu0 0
        %1292 = vmatpush1.bf16.msra.mxu0 0
        %1293 = vmatprep.subr.bf16.mxu0 0
        %1294 = vmatpush1.bf16.msra.mxu0 0
        %1295 = vmatprep.subr.bf16.mxu0 0
        %1296 = vmatpush1.bf16.msra.mxu0 0
        %1297 = vmatprep.subr.bf16.mxu0 0
        %1298 = vmatpush1.bf16.msra.mxu0 0
        %1299 = vmatprep.subr.bf16.mxu0 0
        %1300 = vmatpush1.bf16.msra.mxu0 0
        %1301 = vmatprep.subr.bf16.mxu0 0
        %1302 = vmatpush1.bf16.msra.mxu0 0
        %1303 = vmatprep.mubr.bf16.mxu0 0
        %1304 = vmatmul.mubr.bf16.gmra.mrb[0].mxu0 %v1269
        %v1305 = vpop.f32.mrb[0].mxu0
        %v1306 = vadd.f32 %v600, %v1305
        %v1307 = vpop.f32.mrb[0].mxu0
        %v1308 = vpop.f32.mrb[0].mxu0
        %v1309 = vpop.f32.mrb[0].mxu0
        %1310 = vdwg.mxu0
        %v1311 = vld [vmem:[%s572] sm:$0x1]
        %v1312 = vunpack.c.l.bf16 %v1311
        %v1313 = vmul.f32 %v1306, %v1306
        %v1314 = vsel %vm604, %v1313, 0.0
        %1315 = vadd.xlane.f32.xlu0 %v1314
        %v1316 = vpop.xlane.xlu0 %1315
        %v1317 = vmul.f32 %v1316, %v608
        %v1318 = vadd.f32 %v1317, 1e-06
        %v1319 = vrsqrt.pop %v1318
        %v1320 = vmul.f32 %v1306, %v1319
        %v1321 = vlaneseq
        %v1322 = vshrl.u32 %v1321, 7
        %v1323 = vsub.s32 0, %v1322
        %v1324 = vrot.slane %v1312, %v1323
        %v1325 = vmul.f32 %v1320, %v1324
        %v1326 = vpack.c.bf16 %v1325, %v1325
        %v1327 = vld [vmem:[%s577] sm:$0xf]
        %v1328 = vld [vmem:[%s577 + $0x4] sm:$0xf]
        %v1329 = vld [vmem:[%s577 + $0x8] sm:$0xf]
        %v1330 = vld [vmem:[%s577 + $0xc] sm:$0xf]
        %v1335 = vunpack.c.l.b16 %v1327
        %v1336 = vunpack.c.l.b16 %v1328
        %v1337 = vunpack.c.l.b16 %v1329
        %v1338 = vunpack.c.l.b16 %v1330
        %v1339 = vpack.c.b16 %v1336, %v1335
        %v1340 = vpack.c.b16 %v1338, %v1337
        %v1344 = vsel %vm604, %v1326, 0
        %1346 = vmatprep.subr.bf16.mxu0 0
        %1347 = vmatpush1.bf16.msra.mxu0 %v1339
        %1348 = vmatprep.subr.bf16.mxu0 0
        %1349 = vmatpush1.bf16.msra.mxu0 %v1340
        %1350 = vmatprep.subr.bf16.mxu0 0
        %1351 = vmatpush1.bf16.msra.mxu0 0
        %1352 = vmatprep.subr.bf16.mxu0 0
        %1353 = vmatpush1.bf16.msra.mxu0 0
        %1354 = vmatprep.subr.bf16.mxu0 0
        %1355 = vmatpush1.bf16.msra.mxu0 0
        %1356 = vmatprep.subr.bf16.mxu0 0
        %1357 = vmatpush1.bf16.msra.mxu0 0
        %1358 = vmatprep.subr.bf16.mxu0 0
        %1359 = vmatpush1.bf16.msra.mxu0 0
        %1360 = vmatprep.subr.bf16.mxu0 0
        %1361 = vmatpush1.bf16.msra.mxu0 0
        %1362 = vmatprep.subr.bf16.mxu0 0
        %1363 = vmatpush1.bf16.msra.mxu0 0
        %1364 = vmatprep.subr.bf16.mxu0 0
        %1365 = vmatpush1.bf16.msra.mxu0 0
        %1366 = vmatprep.subr.bf16.mxu0 0
        %1367 = vmatpush1.bf16.msra.mxu0 0
        %1368 = vmatprep.subr.bf16.mxu0 0
        %1369 = vmatpush1.bf16.msra.mxu0 0
        %1370 = vmatprep.subr.bf16.mxu0 0
        %1371 = vmatpush1.bf16.msra.mxu0 0
        %1372 = vmatprep.subr.bf16.mxu0 0
        %1373 = vmatpush1.bf16.msra.mxu0 0
        %1374 = vmatprep.subr.bf16.mxu0 0
        %1375 = vmatpush1.bf16.msra.mxu0 0
        %1376 = vmatprep.subr.bf16.mxu0 0
        %1377 = vmatpush1.bf16.msra.mxu0 0
        %1378 = vmatprep.mubr.bf16.mxu0 0
        %1379 = vmatmul.mubr.bf16.gmra.mrb[0].mxu0 %v1344
        %v1380 = vpop.f32.mrb[0].mxu0
        %v1381 = vadd.f32 0.0, %v1380
        %v1382 = vpop.f32.mrb[0].mxu0
        %v1383 = vpop.f32.mrb[0].mxu0
        %v1384 = vpop.f32.mrb[0].mxu0
        %1385 = vdwg.mxu0
        %v1386 = vsub.f32 0.0, %v1381
        %v1387 = vmul.f32 %v1386, 1.442695
        %v1388 = vpow.pop %v1387
        %v1389 = vadd.f32 %v1388, 1.0
        %v1390 = vrcp.pop %v1389
        %v1391 = vmul.f32 %v1381, %v1390
        %1393 = vrot.lane.b32.xlu0 %v1381, 64
        %v1394 = vpop.permute.xlu0 %1393
        %v1396 = vmul.f32 %v1391, %v1394
        %v1397 = vpack.c.bf16 %v1396, %v1396
        %v1398 = vld [vmem:[%s582] sm:$0xf]
        %v1399 = vld [vmem:[%s582 + $0x4] sm:$0xf]
        %v1400 = vld [vmem:[%s582 + $0x8] sm:$0xf]
        %v1401 = vld [vmem:[%s582 + $0xc] sm:$0xf]
        %v1402 = vld [vmem:[%s582 + $0x10] sm:$0xf]
        %v1403 = vld [vmem:[%s582 + $0x14] sm:$0xf]
        %v1404 = vld [vmem:[%s582 + $0x18] sm:$0xf]
        %v1405 = vld [vmem:[%s582 + $0x1c] sm:$0xf]
        %v1414 = vunpack.c.l.b16 %v1398
        %v1415 = vunpack.c.l.b16 %v1399
        %v1416 = vunpack.c.l.b16 %v1400
        %v1417 = vunpack.c.l.b16 %v1401
        %v1418 = vunpack.c.l.b16 %v1402
        %v1419 = vunpack.c.l.b16 %v1403
        %v1420 = vunpack.c.l.b16 %v1404
        %v1421 = vunpack.c.l.b16 %v1405
        %v1422 = vpack.c.b16 %v1415, %v1414
        %v1423 = vpack.c.b16 %v1417, %v1416
        %v1424 = vpack.c.b16 %v1419, %v1418
        %v1425 = vpack.c.b16 %v1421, %v1420
        %vm1430 = vcmask 523264
        %v1432 = vsel %vm1430, %v1397, 0
        %1434 = vmatprep.subr.bf16.mxu0 0
        %1435 = vmatpush1.bf16.msra.mxu0 %v1422
        %1436 = vmatprep.subr.bf16.mxu0 0
        %1437 = vmatpush1.bf16.msra.mxu0 %v1423
        %1438 = vmatprep.subr.bf16.mxu0 0
        %1439 = vmatpush1.bf16.msra.mxu0 %v1424
        %1440 = vmatprep.subr.bf16.mxu0 0
        %1441 = vmatpush1.bf16.msra.mxu0 %v1425
        %1442 = vmatprep.subr.bf16.mxu0 0
        %1443 = vmatpush1.bf16.msra.mxu0 0
        %1444 = vmatprep.subr.bf16.mxu0 0
        %1445 = vmatpush1.bf16.msra.mxu0 0
        %1446 = vmatprep.subr.bf16.mxu0 0
        %1447 = vmatpush1.bf16.msra.mxu0 0
        %1448 = vmatprep.subr.bf16.mxu0 0
        %1449 = vmatpush1.bf16.msra.mxu0 0
        %1450 = vmatprep.subr.bf16.mxu0 0
        %1451 = vmatpush1.bf16.msra.mxu0 0
        %1452 = vmatprep.subr.bf16.mxu0 0
        %1453 = vmatpush1.bf16.msra.mxu0 0
        %1454 = vmatprep.subr.bf16.mxu0 0
        %1455 = vmatpush1.bf16.msra.mxu0 0
        %1456 = vmatprep.subr.bf16.mxu0 0
        %1457 = vmatpush1.bf16.msra.mxu0 0
        %1458 = vmatprep.subr.bf16.mxu0 0
        %1459 = vmatpush1.bf16.msra.mxu0 0
        %1460 = vmatprep.subr.bf16.mxu0 0
        %1461 = vmatpush1.bf16.msra.mxu0 0
        %1462 = vmatprep.subr.bf16.mxu0 0
        %1463 = vmatpush1.bf16.msra.mxu0 0
        %1464 = vmatprep.subr.bf16.mxu0 0
        %1465 = vmatpush1.bf16.msra.mxu0 0
        %1466 = vmatprep.mubr.bf16.mxu0 0
        %1467 = vmatmul.mubr.bf16.gmra.mrb[0].mxu0 %v1432
        %v1468 = vpop.f32.mrb[0].mxu0
        %v1469 = vadd.f32 %v1306, %v1468
        %v1470 = vpop.f32.mrb[0].mxu0
        %v1471 = vpop.f32.mrb[0].mxu0
        %v1472 = vpop.f32.mrb[0].mxu0
        %1473 = vdwg.mxu0
        %1474 = vst.msk [vmem:[#allocation2] sm:$0xff] %vm604, %v1469
        %p1475 = scmp.eq.s32.totalorder %s33, 1
        // Predicated region
        $region73: #{qwen2_forward.1} parent=67 // pred_check
          %p1476 = pneg %p1475
        $region74: #{qwen2_forward.1} parent=67 // pred_check_branch
          %1478 = sbr.rel (%p1476) target = $region76
        $region75: #{qwen2_forward.1} parent=67 // pred_region
          %v1479 = vld [vmem:[%s10] sm:$0x1]
          %v1480 = vunpack.c.l.bf16 %v1479
          %v1481 = vmul.f32 %v1469, %v1469
          %v1482 = vsel %vm604, %v1481, 0.0
          %1483 = vadd.xlane.f32.xlu0 %v1482
          %v1484 = vpop.xlane.xlu0 %1483
          %v1485 = vmul.f32 %v1484, %v608
          %v1486 = vadd.f32 %v1485, 1e-06
          %v1487 = vrsqrt.pop %v1486
          %v1488 = vmul.f32 %v1469, %v1487
          %v1489 = vlaneseq
          %v1490 = vshrl.u32 %v1489, 7
          %v1491 = vsub.s32 0, %v1490
          %v1492 = vrot.slane %v1480, %v1491
          %v1493 = vmul.f32 %v1488, %v1492
          %v1494 = vpack.c.bf16 %v1493, %v1493
          %v1495 = vld [vmem:[%s11] sm:$0xf]
          %v1496 = vld [vmem:[%s11 + $0x4] sm:$0xf]
          %v1497 = vld [vmem:[%s11 + $0x8] sm:$0xf]
          %v1498 = vld [vmem:[%s11 + $0xc] sm:$0xf]
          %v1503 = vunpack.c.l.b16 %v1495
          %v1504 = vunpack.c.l.b16 %v1496
          %v1505 = vunpack.c.l.b16 %v1497
          %v1506 = vunpack.c.l.b16 %v1498
          %v1507 = vpack.c.b16 %v1504, %v1503
          %v1508 = vpack.c.b16 %v1506, %v1505
          %v1512 = vsel %vm604, %v1494, 0
          %1514 = vmatprep.subr.bf16.mxu0 0
          %1515 = vmatpush1.bf16.msra.mxu0 %v1507
          %1516 = vmatprep.subr.bf16.mxu0 0
          %1517 = vmatpush1.bf16.msra.mxu0 %v1508
          %1518 = vmatprep.subr.bf16.mxu0 0
          %1519 = vmatpush1.bf16.msra.mxu0 0
          %1520 = vmatprep.subr.bf16.mxu0 0
          %1521 = vmatpush1.bf16.msra.mxu0 0
          %1522 = vmatprep.subr.bf16.mxu0 0
          %1523 = vmatpush1.bf16.msra.mxu0 0
          %1524 = vmatprep.subr.bf16.mxu0 0
          %1525 = vmatpush1.bf16.msra.mxu0 0
          %1526 = vmatprep.subr.bf16.mxu0 0
          %1527 = vmatpush1.bf16.msra.mxu0 0
          %1528 = vmatprep.subr.bf16.mxu0 0
          %1529 = vmatpush1.bf16.msra.mxu0 0
          %1530 = vmatprep.subr.bf16.mxu0 0
          %1531 = vmatpush1.bf16.msra.mxu0 0
          %1532 = vmatprep.subr.bf16.mxu0 0
          %1533 = vmatpush1.bf16.msra.mxu0 0
          %1534 = vmatprep.subr.bf16.mxu0 0
          %1535 = vmatpush1.bf16.msra.mxu0 0
          %1536 = vmatprep.subr.bf16.mxu0 0
          %1537 = vmatpush1.bf16.msra.mxu0 0
          %1538 = vmatprep.subr.bf16.mxu0 0
          %1539 = vmatpush1.bf16.msra.mxu0 0
          %1540 = vmatprep.subr.bf16.mxu0 0
          %1541 = vmatpush1.bf16.msra.mxu0 0
          %1542 = vmatprep.subr.bf16.mxu0 0
          %1543 = vmatpush1.bf16.msra.mxu0 0
          %1544 = vmatprep.subr.bf16.mxu0 0
          %1545 = vmatpush1.bf16.msra.mxu0 0
          %1546 = vmatprep.mubr.bf16.mxu0 0
          %1547 = vmatmul.mubr.bf16.gmra.mrb[0].mxu0 %v1512
          %v1548 = vpop.f32.mrb[0].mxu0
          %v1549 = vadd.f32 0.0, %v1548
          %v1550 = vpop.f32.mrb[0].mxu0
          %v1551 = vpop.f32.mrb[0].mxu0
          %v1552 = vpop.f32.mrb[0].mxu0
          %1553 = vdwg.mxu0
          %v1554 = vpack.c.bf16 %v1549, %v1549
          %vm1555 = vcmask 519168
          %1556 = vst.msk [vmem:[%s539] sm:$0xf] %vm1555, %v1554
        $region76: #{qwen2_forward.1} parent=67 // pred_fallthru
          _
        %s1557 = sand.u32 %s340, 1
        %s1558 = scalar_lea.sflag [#allocation4], %s1557
        %s1559 = sand.u32 %s340, 1
        %s1560 = smul.addr %s1559, 4
        %s1561 = scalar_lea.vmem [#allocation3], %s1560
        %p1562 = scmp.lt.s32.totalorder %s33, 1
        %s1563 = scalar_select %p1562, %s33, 1
        %p1564 = scmp.lt.s32.totalorder %s32, 1
        %s1565 = scalar_select %p1564, %s32, 1
        %s1566 = smul.addr %s1563, 2
        %s1567 = sadd.s32 %s1565, %s1566
        %s1568 = smul.addr %s1567, 4
        %s1569 = scalar_lea.vmem %s13, %s1568
        // Predicated region
        $region77: #{qwen2_forward.1} parent=67 // pred_check
          %p1570 = pneg %p350
        $region78: #{qwen2_forward.1} parent=67 // pred_check_branch
          %1572 = sbr.rel (%p1570) target = $region80
        $region79: #{qwen2_forward.1} parent=67 // pred_region
          %s1574 = ssub.s32 64, 64
          %1575 = vsyncadd %s1558, %s1574
          %s1576 = smul.addr %s32, 64
          %s1577 = scalar_lea.hbm %s12, %s1576
          %s1579 = sshll.u32 %s1561, 4
          %s1580 = int_to_ptr.vmem [resolvable:$true] %s1579
          %1582 = dma.vmem_to_hbm [thread:$0]  %s1580, 64, %s1577, %s1558
        $region80: #{qwen2_forward.1} parent=67 // pred_fallthru
          _
        // Predicated region
        $region81: #{qwen2_forward.1} parent=67 // pred_check
          %p1583 = pneg %p378
        $region82: #{qwen2_forward.1} parent=67 // pred_check_branch
          %1585 = sbr.rel (%p1583) target = $region84
        $region83: #{qwen2_forward.1} parent=67 // pred_region
          _
        $region84: #{qwen2_forward.1} parent=67 // pred_fallthru
          _
      $region68: #{qwen2_forward.1} parent=5 // pred_fallthru
        _
      %p1586 = scmp.le.s32.totalorder 2, %s23
      // Predicated region
      $region85: #{qwen2_forward.1} parent=5 // pred_check
        %p1587 = pneg %p1586
      $region86: #{qwen2_forward.1} parent=5 // pred_check_branch
        %1589 = sbr.rel (%p1587) target = $region88
      $region87: #{qwen2_forward.1} parent=5 // pred_region
        %s1590 = ssub.s32 %s23, 2
        // Predicated region
        $region89: #{qwen2_forward.1} parent=87 // pred_check
          %p1591 = pneg %p356
        $region90: #{qwen2_forward.1} parent=87 // pred_check_branch
          %1593 = sbr.rel (%p1591) target = $region92
        $region91: #{qwen2_forward.1} parent=87 // pred_region
          %s1594 = sand.u32 %s341, 1
          %s1595 = scalar_lea.sflag [#allocation4], %s1594
          %s1596 = sand.u32 %s341, 1
          %s1597 = smul.addr %s1596, 4
          %s1598 = scalar_lea.vmem [#allocation3], %s1597
          %1599 = dma.done %s1595, 64
        $region92: #{qwen2_forward.1} parent=87 // pred_fallthru
          _
        // Predicated region
        $region93: #{qwen2_forward.1} parent=87 // pred_check
          %p1600 = pneg %p384
        $region94: #{qwen2_forward.1} parent=87 // pred_check_branch
          %1602 = sbr.rel (%p1600) target = $region96
        $region95: #{qwen2_forward.1} parent=87 // pred_region
          %p1603 = scmp.lt.s32.totalorder %s35, 1
          %s1604 = scalar_select %p1603, %s35, 1
          %p1605 = scmp.lt.s32.totalorder %s34, 1
          %s1606 = scalar_select %p1605, %s34, 1
          %s1607 = smul.addr %s1604, 2
          %s1608 = sadd.s32 %s1606, %s1607
          %s1609 = smul.addr %s1608, 4
          %s1610 = scalar_lea.vmem %s13, %s1609
        $region96: #{qwen2_forward.1} parent=87 // pred_fallthru
          _
      $region88: #{qwen2_forward.1} parent=5 // pred_fallthru
        _
    $region6: #{qwen2_forward.1} parent=1 // loop_footer
      %s27 = sadd.s32 1, %s23
    $region7: #{qwen2_forward.1} parent=1 // loop_footer_branch
      %22 = sbr.rel target = $region3
    $region8: #{qwen2_forward.1} parent=1 // loop_exit
      _
    %1611 = vsyncpa [#allocation4], 1
    %s1612 = scalar_lea.sflag [#allocation4], 1
    %1613 = vsyncpa %s1612, 1

</llo_original>
